<compile_context>
chip_gen: v7x
topology: tpu7x:2x2x1
jax: 0.10.0
libtpu: 0.0.40
codegen_flags: <defaults>
</compile_context>

<pallas_src>
import functools

import jax
import jax.numpy as jnp
import numpy as np
from jax import lax
from jax.experimental import pallas as pl
from jax.experimental.pallas import tpu as pltpu


# --------------------------------- kernel ------------------------------------

def _resblock_kernel(*refs, K, pad, T, Bblk, Cin, Cout, n_groups,
                     use_film, res_identity, eps=1e-5):
    if res_identity:
        (x_ref, cond_ref, gp_ref,
         w1_ref, b1_ref, g1_ref, be1_ref,
         wc_ref, bc_ref,
         w2_ref, b2_ref, g2_ref, be2_ref,
         out_ref) = refs
        wr_ref = br_ref = None
    else:
        (x_ref, cond_ref, gp_ref,
         w1_ref, b1_ref, g1_ref, be1_ref,
         wc_ref, bc_ref,
         w2_ref, b2_ref, g2_ref, be2_ref,
         wr_ref, br_ref,
         out_ref) = refs

    f32 = jnp.float32
    bf16 = jnp.bfloat16
    R = Bblk * T
    inv_n = 1.0 / float(T * (Cout // n_groups))
    gp = gp_ref[...]                                   # (Cout, Cout) same-group projection

    def mish(v):
        # mish(x) = x * tanh(softplus(x)) = x * (e^2 + 2e) / (e^2 + 2e + 2), e = exp(x).
        # 1 EUP exp + 1 approx reciprocal (vs exp/log/tanh in the naive form).
        e = jnp.exp(jnp.minimum(v, 30.0))              # beyond the clamp the ratio == 1.0 in f32
        n = e * (e + 2.0)
        return v * n * pl.reciprocal(n + 2.0, approx=True)

    def conv_same(h3, w_ref, cin):
        """'same' Conv1d as one im2col MXU matmul: (R, K*cin) x (K*cin, Cout).

        The K shifted windows are built once (zero boundary rows + static
        slices) and concatenated along the lane axis; bf16 MXU operands,
        f32 accumulation, no VMEM scratch round-trip.
        """
        zer = jnp.zeros((Bblk, pad, cin), f32)
        hp = jnp.concatenate([zer, h3, zer], axis=1)   # (Bblk, T + 2*pad, cin)
        cols = jnp.concatenate([hp[:, k:k + T, :] for k in range(K)], axis=-1)
        return jnp.dot(cols.reshape(R, K * cin).astype(bf16), w_ref[...],
                       preferred_element_type=f32)     # (R, Cout)

    def group_norm(h3, gamma, beta):
        """GroupNorm on a (Bblk, T, Cout) tile.

        Group reduce + broadcast via the single precomputed (Cout, Cout)
        same-group projection (used for both mean and variance); rsqrt in
        channel space (EUP); normalize is one fused multiply-add.
        """
        mean_c = jnp.dot(jnp.sum(h3, axis=1), gp, preferred_element_type=f32) * inv_n
        dev = h3 - mean_c[:, None, :]
        var_c = jnp.dot(jnp.sum(dev * dev, axis=1), gp,
                        preferred_element_type=f32) * inv_n        # (Bblk, Cout)
        scale = lax.rsqrt(var_c + eps) * gamma                     # (Bblk, Cout)
        return dev * scale[:, None, :] + beta                      # single FMA

    # ---- conv1 -> GroupNorm -> Mish (channels-last throughout) ----
    x_tc = x_ref[...].astype(f32)                                  # (Bblk, T, Cin)
    h = conv_same(x_tc, w1_ref, Cin) + b1_ref[...]                 # (R, Cout)
    h3 = mish(group_norm(h.reshape(Bblk, T, Cout), g1_ref[...], be1_ref[...]))

    # ---- conditioning: Mish -> Linear -> FiLM (or additive bias) over T ----
    c = cond_ref[...].astype(f32)                                  # (Bblk, cond_dim)
    ce = jnp.dot(mish(c).astype(bf16), wc_ref[...],
                 preferred_element_type=f32) + bc_ref[...]         # (Bblk, cond_ch)
    if use_film:
        h3 = ce[:, None, :Cout] * h3 + ce[:, None, Cout:]
    else:
        h3 = h3 + ce[:, None, :]

    # ---- conv2 -> GroupNorm -> Mish ----
    h2 = conv_same(h3, w2_ref, Cout) + b2_ref[...]
    h23 = mish(group_norm(h2.reshape(Bblk, T, Cout), g2_ref[...], be2_ref[...]))

    # ---- residual: f32 identity add (Cin == Cout) or 1x1 conv on the MXU ----
    if res_identity:
        out3 = h23 + x_tc
    else:
        res = jnp.dot(x_tc.reshape(R, Cin).astype(bf16), wr_ref[...],
                      preferred_element_type=f32) + br_ref[...]    # (R, Cout)
        out3 = h23 + res.reshape(Bblk, T, Cout)

    out_ref[...] = out3.astype(out_ref.dtype)                      # lane-dense store


# -------------------------------- wrapper -------------------------------------

def _tpu_generation():
    """Returns (vmem_bytes_per_core, is_v7x); conservative default if unknown."""
    try:
        kind = jax.devices()[0].device_kind.lower()
    except Exception:
        kind = ""
    if "7" in kind:                 # v7x: 64 MiB VMEM per TC, 2 TCs per chip
        return 64 << 20, True
    return 128 << 20, False         # v4 / v5e / v6e: 128 MiB VMEM, 1 TC


def _pick_bblk(B, T, Cin, Cout, K, *, vmem_limit, prefer_steps):
    """Largest divisor of B whose flattened row tile fits the VMEM budget.

    On v7x prefer >= 2 grid steps so the 'parallel' batch axis spans both
    TensorCores (relaxing the row floor rather than collapsing to one step).
    """
    # rough f32 bytes per flattened row of live intermediates (x, im2col cols,
    # conv outputs, GN deviations, etc.)
    per_row = 4 * (2 * Cin + K * Cin + K * Cout + 8 * Cout)
    max_rows = int(min(8192, max(T, (vmem_limit // 3) // max(per_row, 1))))
    best = 1
    for d in range(1, B + 1):
        if B % d == 0 and d * T <= max_rows:
            best = d
    if prefer_steps > 1 and B // best < prefer_steps:
        for d in range(best - 1, 0, -1):
            if B % d == 0 and B // d >= prefer_steps:
                return d
    return best


def forward_pallas(x, cond, p, *, K=3, n_groups=8, use_film=False, bblk=None):
    """x: (B, Cin, T) NCT, cond: (B, cond_dim).  Returns (B, Cout, T)."""
    B, Cin, T = x.shape
    Cout = p["w1"].shape[0]
    cond_dim = cond.shape[1]
    cond_ch = 2 * Cout if use_film else Cout
    pad = K // 2
    res_identity = "wr" not in p          # module uses nn.Identity iff Cin == Cout
    if res_identity:
        assert Cin == Cout, "identity residual requires Cin == Cout"

    vmem_phys, is_v7x = _tpu_generation()
    vmem_limit = int(min(vmem_phys * 3 // 4, 96 << 20))   # ~48 MiB on v7x, 96 MiB otherwise
    if bblk is None:
        bblk = _pick_bblk(B, T, Cin, Cout, K, vmem_limit=vmem_limit,
                          prefer_steps=2 if is_v7x else 1)
    assert B % bblk == 0

    # ---- one-time weight relayout (bf16 MXU operands, f32 biases, im2col weights) ----
    bf16 = jnp.bfloat16
    row = lambda v: v.reshape(1, -1).astype(jnp.float32)
    w1 = jnp.transpose(p["w1"], (2, 1, 0)).reshape(K * Cin, Cout).astype(bf16)
    w2 = jnp.transpose(p["w2"], (2, 1, 0)).reshape(K * Cout, Cout).astype(bf16)
    wc = jnp.transpose(p["wl"], (1, 0)).astype(bf16)               # (cond_dim, cond_ch)

    # same-group projection P[c, c'] = 1 iff group(c) == group(c') (mean & var broadcast)
    gid = np.arange(Cout) // (Cout // n_groups)
    gp = jnp.asarray((gid[:, None] == gid[None, :]).astype(np.float32))

    # channels-last activations: lane-dense input DMA and output stores
    x_cl = jnp.transpose(x, (0, 2, 1))                             # (B, T, Cin)

    kernel = functools.partial(
        _resblock_kernel, K=K, pad=pad, T=T, Bblk=bblk, Cin=Cin, Cout=Cout,
        n_groups=n_groups, use_film=use_film, res_identity=res_identity)

    def const(shape):
        # TODO(synk): on v7x add pipeline_mode=pl.Buffered(1) here to single-buffer
        # the constant-index blocks (halves their VMEM footprint).
        return pl.BlockSpec(shape, lambda i, _n=len(shape): (0,) * _n)

    in_specs = [
        pl.BlockSpec((bblk, T, Cin), lambda i: (i, 0, 0)),         # x, channels-last
        pl.BlockSpec((bblk, cond_dim), lambda i: (i, 0)),          # cond, batch-blocked
        const((Cout, Cout)),                                       # GroupNorm projection
        const((K * Cin, Cout)), const((1, Cout)), const((1, Cout)), const((1, Cout)),
        const((cond_dim, cond_ch)), const((1, cond_ch)),
        const((K * Cout, Cout)), const((1, Cout)), const((1, Cout)), const((1, Cout)),
    ]
    args = [x_cl, cond, gp,
            w1, row(p["b1"]), row(p["g1"]), row(p["be1"]),
            wc, row(p["bl"]),
            w2, row(p["b2"]), row(p["g2"]), row(p["be2"])]
    if not res_identity:
        in_specs += [const((Cin, Cout)), const((1, Cout))]
        args += [p["wr"][:, :, 0].T.astype(bf16), row(p["br"])]

    fn = pl.pallas_call(
        kernel,
        grid_spec=pltpu.PrefetchScalarGridSpec(
            num_scalar_prefetch=0,
            grid=(B // bblk,),
            in_specs=in_specs,
            out_specs=pl.BlockSpec((bblk, T, Cout), lambda i: (i, 0, 0)),
        ),
        out_shape=jax.ShapeDtypeStruct((B, T, Cout), jnp.float32),
        compiler_params=pltpu.CompilerParams(
            dimension_semantics=("parallel",),
            vmem_limit_bytes=vmem_limit),
    )
    out_cl = fn(*args)                                             # (B, T, Cout)
    return jnp.transpose(out_cl, (0, 2, 1))                        # back to NCT


# ------------------------- pure-JAX reference (checking) ----------------------

def reference_forward(x, cond, p, *, n_groups=8, use_film=False):
    def conv1d(xx, w, b, pad):
        y = lax.conv_general_dilated(xx, w, window_strides=(1,),
                                     padding=[(pad, pad)],
                                     dimension_numbers=("NCH", "OIH", "NCH"))
        return y + b[None, :, None]

    def gn(xx, gamma, beta, eps=1e-5):
        Bb, C, Tt = xx.shape
        xr = xx.reshape(Bb, n_groups, C // n_groups, Tt)
        mean = xr.mean(axis=(2, 3), keepdims=True)
        var = xr.var(axis=(2, 3), keepdims=True)
        xr = (xr - mean) / jnp.sqrt(var + eps)
        return xr.reshape(Bb, C, Tt) * gamma[None, :, None] + beta[None, :, None]

    def mish(v):
        return v * jnp.tanh(jnp.logaddexp(v, 0.0))

    K = p["w1"].shape[-1]
    pad = K // 2
    Cout = p["w1"].shape[0]
    out = mish(gn(conv1d(x, p["w1"], p["b1"], pad), p["g1"], p["be1"]))
    ce = (mish(cond) @ p["wl"].T + p["bl"])[:, :, None]
    if use_film:
        out = ce[:, :Cout] * out + ce[:, Cout:]
    else:
        out = out + ce
    out = mish(gn(conv1d(out, p["w2"], p["b2"], pad), p["g2"], p["be2"]))
    res = conv1d(x, p["wr"], p["br"], 0) if "wr" in p else x
    return out + res


# ----------------------------------- main --------------------------------------

if __name__ == "__main__":
    def make_params(key, Cin, Cout, cond_dim, K, use_film, with_res_conv):
        ks = jax.random.split(key, 12)
        rnd = lambda k, shape, s=0.2: s * jax.random.normal(k, shape, jnp.float32)
        cond_ch = 2 * Cout if use_film else Cout
        prm = dict(
            w1=rnd(ks[0], (Cout, Cin, K)), b1=rnd(ks[1], (Cout,)),
            g1=1.0 + rnd(ks[2], (Cout,)), be1=rnd(ks[3], (Cout,)),
            wl=rnd(ks[4], (cond_ch, cond_dim)), bl=rnd(ks[5], (cond_ch,)),
            w2=rnd(ks[6], (Cout, Cout, K)), b2=rnd(ks[7], (Cout,)),
            g2=1.0 + rnd(ks[8], (Cout,)), be2=rnd(ks[9], (Cout,)),
        )
        if with_res_conv:
            prm["wr"] = rnd(ks[10], (Cout, Cin, 1))
            prm["br"] = rnd(ks[11], (Cout,))
        return prm

    key = jax.random.PRNGKey(0)
    k1, k2, k3, k4, k5, k6 = jax.random.split(key, 6)
    K, G = 3, 8
    # kernel uses bf16 MXU operands (f32 accumulation) and an approx reciprocal
    # in Mish vs a pure-f32 reference -> tolerance reflects bf16 rounding.
    tol = dict(rtol=5e-2, atol=5e-2)

    # Case A: Cin != Cout -> real 1x1 residual conv, additive conditioning.
    B, Cin, Cout, cond_dim, T = 2, 8, 16, 32, 16
    pA = make_params(k1, Cin, Cout, cond_dim, K, False, True)
    xA = jax.random.normal(k2, (B, Cin, T), jnp.float32)
    cA = jax.random.normal(k3, (B, cond_dim), jnp.float32)
    outA = jax.block_until_ready(forward_pallas(xA, cA, pA, K=K, n_groups=G, use_film=False))
    refA = reference_forward(xA, cA, pA, n_groups=G, use_film=False)
    np.testing.assert_allclose(np.asarray(outA), np.asarray(refA), **tol)

    # Case B: Cin == Cout -> identity residual (f32 skip), FiLM conditioning.
    B, Cin, Cout, cond_dim, T = 4, 16, 16, 24, 16
    pB = make_params(k4, Cin, Cout, cond_dim, K, True, False)
    xB = jax.random.normal(k5, (B, Cin, T), jnp.float32)
    cB = jax.random.normal(k6, (B, cond_dim), jnp.float32)
    outB = jax.block_until_ready(forward_pallas(xB, cB, pB, K=K, n_groups=G, use_film=True))
    refB = reference_forward(xB, cB, pB, n_groups=G, use_film=True)
    np.testing.assert_allclose(np.asarray(outB), np.asarray(refB), **tol)

    print("KERNEL_OK")
</pallas_src>

<mosaic_0001>
module attributes {stable_mosaic.version = 11 : i64} {
  func.func @_resblock_kernel(%arg0: i32, %arg1: memref<2x16x8xf32, #tpu.memory_space<vmem>>, %arg2: memref<2x32xf32, #tpu.memory_space<vmem>>, %arg3: memref<16x16xf32, #tpu.memory_space<vmem>>, %arg4: memref<24x16xbf16, #tpu.memory_space<vmem>>, %arg5: memref<1x16xf32, #tpu.memory_space<vmem>>, %arg6: memref<1x16xf32, #tpu.memory_space<vmem>>, %arg7: memref<1x16xf32, #tpu.memory_space<vmem>>, %arg8: memref<32x16xbf16, #tpu.memory_space<vmem>>, %arg9: memref<1x16xf32, #tpu.memory_space<vmem>>, %arg10: memref<48x16xbf16, #tpu.memory_space<vmem>>, %arg11: memref<1x16xf32, #tpu.memory_space<vmem>>, %arg12: memref<1x16xf32, #tpu.memory_space<vmem>>, %arg13: memref<1x16xf32, #tpu.memory_space<vmem>>, %arg14: memref<8x16xbf16, #tpu.memory_space<vmem>>, %arg15: memref<1x16xf32, #tpu.memory_space<vmem>>, %arg16: memref<2x16x16xf32, #tpu.memory_space<vmem>>) attributes {dimension_semantics = [#tpu.dimension_semantics<parallel>], iteration_bounds = array<i64: 1>, scalar_prefetch = 0 : i64, scratch_operands = 0 : i64, tpu.core_type = #tpu.core_type<tc>, window_params = [{transform_indices = @transform_0, window_bounds = array<i64: 2, 16, 8>}, {transform_indices = @transform_1, window_bounds = array<i64: 2, 32>}, {pipeline_mode = #tpu.pipeline_mode<synchronous>, transform_indices = @transform_2, window_bounds = array<i64: 16, 16>}, {pipeline_mode = #tpu.pipeline_mode<synchronous>, transform_indices = @transform_3, window_bounds = array<i64: 24, 16>}, {pipeline_mode = #tpu.pipeline_mode<synchronous>, transform_indices = @transform_4, window_bounds = array<i64: 1, 16>}, {pipeline_mode = #tpu.pipeline_mode<synchronous>, transform_indices = @transform_5, window_bounds = array<i64: 1, 16>}, {pipeline_mode = #tpu.pipeline_mode<synchronous>, transform_indices = @transform_6, window_bounds = array<i64: 1, 16>}, {pipeline_mode = #tpu.pipeline_mode<synchronous>, transform_indices = @transform_7, window_bounds = array<i64: 32, 16>}, {pipeline_mode = #tpu.pipeline_mode<synchronous>, transform_indices = @transform_8, window_bounds = array<i64: 1, 16>}, {pipeline_mode = #tpu.pipeline_mode<synchronous>, transform_indices = @transform_9, window_bounds = array<i64: 48, 16>}, {pipeline_mode = #tpu.pipeline_mode<synchronous>, transform_indices = @transform_10, window_bounds = array<i64: 1, 16>}, {pipeline_mode = #tpu.pipeline_mode<synchronous>, transform_indices = @transform_11, window_bounds = array<i64: 1, 16>}, {pipeline_mode = #tpu.pipeline_mode<synchronous>, transform_indices = @transform_12, window_bounds = array<i64: 1, 16>}, {pipeline_mode = #tpu.pipeline_mode<synchronous>, transform_indices = @transform_13, window_bounds = array<i64: 8, 16>}, {pipeline_mode = #tpu.pipeline_mode<synchronous>, transform_indices = @transform_14, window_bounds = array<i64: 1, 16>}, {transform_indices = @transform_15, window_bounds = array<i64: 2, 16, 16>}]} {
    %c0 = arith.constant 0 : index
    %c0_0 = arith.constant 0 : index
    %0 = vector.load %arg3[%c0, %c0_0] : memref<16x16xf32, #tpu.memory_space<vmem>>, vector<16x16xf32>
    %c0_1 = arith.constant 0 : index
    %c0_2 = arith.constant 0 : index
    %c0_3 = arith.constant 0 : index
    %1 = vector.load %arg1[%c0_1, %c0_2, %c0_3] : memref<2x16x8xf32, #tpu.memory_space<vmem>>, vector<2x16x8xf32>
    %cst = arith.constant 0.000000e+00 : f32
    %2 = vector.broadcast %cst : f32 to vector<2x1x8xf32>
    %3 = tpu.concatenate %2, %1, %2 in 1 : vector<2x1x8xf32>, vector<2x16x8xf32>, vector<2x1x8xf32> -> vector<2x18x8xf32>
    %4 = vector.extract_strided_slice %3 {offsets = [0, 0, 0], sizes = [2, 16, 8], strides = [1, 1, 1]} : vector<2x18x8xf32> to vector<2x16x8xf32>
    %5 = vector.extract_strided_slice %3 {offsets = [0, 1, 0], sizes = [2, 16, 8], strides = [1, 1, 1]} : vector<2x18x8xf32> to vector<2x16x8xf32>
    %6 = vector.extract_strided_slice %3 {offsets = [0, 2, 0], sizes = [2, 16, 8], strides = [1, 1, 1]} : vector<2x18x8xf32> to vector<2x16x8xf32>
    %7 = tpu.concatenate %4, %5, %6 in 2 : vector<2x16x8xf32>, vector<2x16x8xf32>, vector<2x16x8xf32> -> vector<2x16x24xf32>
    %8 = vector.shape_cast %7 : vector<2x16x24xf32> to vector<32x24xf32>
    %9 = arith.truncf %8 : vector<32x24xf32> to vector<32x24xbf16>
    %c0_4 = arith.constant 0 : index
    %c0_5 = arith.constant 0 : index
    %10 = vector.load %arg4[%c0_4, %c0_5] : memref<24x16xbf16, #tpu.memory_space<vmem>>, vector<24x16xbf16>
    %cst_6 = arith.constant dense<0.000000e+00> : vector<32x16xf32>
    %11 = tpu.matmul %9, %10, %cst_6 {dimension_numbers = #tpu.dot_dimension_numbers<[1], [0], [0], [1], [0, 0, 1, 1], [], []>} : vector<32x24xbf16>, vector<24x16xbf16>, vector<32x16xf32> -> vector<32x16xf32>
    %c0_7 = arith.constant 0 : index
    %c0_8 = arith.constant 0 : index
    %12 = vector.load %arg5[%c0_7, %c0_8] : memref<1x16xf32, #tpu.memory_space<vmem>>, vector<1x16xf32>
    %13 = vector.broadcast %12 : vector<1x16xf32> to vector<32x16xf32>
    %14 = arith.addf %11, %13 : vector<32x16xf32>
    %15 = vector.shape_cast %14 : vector<32x16xf32> to vector<2x16x16xf32>
    %c0_9 = arith.constant 0 : index
    %c0_10 = arith.constant 0 : index
    %16 = vector.load %arg6[%c0_9, %c0_10] : memref<1x16xf32, #tpu.memory_space<vmem>>, vector<1x16xf32>
    %c0_11 = arith.constant 0 : index
    %c0_12 = arith.constant 0 : index
    %17 = vector.load %arg7[%c0_11, %c0_12] : memref<1x16xf32, #tpu.memory_space<vmem>>, vector<1x16xf32>
    %cst_13 = arith.constant dense<0.000000e+00> : vector<2x16xf32>
    %18 = vector.multi_reduction <add>, %15, %cst_13 [1] : vector<2x16x16xf32> to vector<2x16xf32>
    %cst_14 = arith.constant dense<0.000000e+00> : vector<2x16xf32>
    %19 = tpu.matmul %18, %0, %cst_14 {dimension_numbers = #tpu.dot_dimension_numbers<[1], [0], [0], [1], [0, 0, 1, 1], [], []>} : vector<2x16xf32>, vector<16x16xf32>, vector<2x16xf32> -> vector<2x16xf32>
    %cst_15 = arith.constant 3.125000e-02 : f32
    %20 = vector.broadcast %cst_15 : f32 to vector<2x16xf32>
    %21 = arith.mulf %19, %20 : vector<2x16xf32>
    %22 = vector.shape_cast %21 : vector<2x16xf32> to vector<2x1x16xf32>
    %23 = vector.broadcast %22 : vector<2x1x16xf32> to vector<2x16x16xf32>
    %24 = arith.subf %15, %23 : vector<2x16x16xf32>
    %25 = arith.mulf %24, %24 : vector<2x16x16xf32>
    %cst_16 = arith.constant dense<0.000000e+00> : vector<2x16xf32>
    %26 = vector.multi_reduction <add>, %25, %cst_16 [1] : vector<2x16x16xf32> to vector<2x16xf32>
    %cst_17 = arith.constant dense<0.000000e+00> : vector<2x16xf32>
    %27 = tpu.matmul %26, %0, %cst_17 {dimension_numbers = #tpu.dot_dimension_numbers<[1], [0], [0], [1], [0, 0, 1, 1], [], []>} : vector<2x16xf32>, vector<16x16xf32>, vector<2x16xf32> -> vector<2x16xf32>
    %cst_18 = arith.constant 3.125000e-02 : f32
    %28 = vector.broadcast %cst_18 : f32 to vector<2x16xf32>
    %29 = arith.mulf %27, %28 : vector<2x16xf32>
    %cst_19 = arith.constant 9.99999974E-6 : f32
    %30 = vector.broadcast %cst_19 : f32 to vector<2x16xf32>
    %31 = arith.addf %29, %30 : vector<2x16xf32>
    %32 = math.rsqrt %31 : vector<2x16xf32>
    %33 = vector.broadcast %16 : vector<1x16xf32> to vector<2x16xf32>
    %34 = arith.mulf %32, %33 : vector<2x16xf32>
    %35 = vector.shape_cast %34 : vector<2x16xf32> to vector<2x1x16xf32>
    %36 = vector.broadcast %35 : vector<2x1x16xf32> to vector<2x16x16xf32>
    %37 = arith.mulf %24, %36 : vector<2x16x16xf32>
    %38 = vector.shape_cast %17 : vector<1x16xf32> to vector<1x1x16xf32>
    %39 = vector.broadcast %38 : vector<1x1x16xf32> to vector<2x16x16xf32>
    %40 = arith.addf %37, %39 : vector<2x16x16xf32>
    %cst_20 = arith.constant 3.000000e+01 : f32
    %41 = vector.broadcast %cst_20 : f32 to vector<2x16x16xf32>
    %42 = arith.minimumf %40, %41 : vector<2x16x16xf32>
    %43 = math.exp %42 : vector<2x16x16xf32>
    %cst_21 = arith.constant 2.000000e+00 : f32
    %44 = vector.broadcast %cst_21 : f32 to vector<2x16x16xf32>
    %45 = arith.addf %43, %44 : vector<2x16x16xf32>
    %46 = arith.mulf %43, %45 : vector<2x16x16xf32>
    %47 = arith.mulf %40, %46 : vector<2x16x16xf32>
    %cst_22 = arith.constant 2.000000e+00 : f32
    %48 = vector.broadcast %cst_22 : f32 to vector<2x16x16xf32>
    %49 = arith.addf %46, %48 : vector<2x16x16xf32>
    %50 = tpu.reciprocal %49 {approx = true} : vector<2x16x16xf32> -> vector<2x16x16xf32>
    %51 = arith.mulf %47, %50 : vector<2x16x16xf32>
    %c0_23 = arith.constant 0 : index
    %c0_24 = arith.constant 0 : index
    %52 = vector.load %arg2[%c0_23, %c0_24] : memref<2x32xf32, #tpu.memory_space<vmem>>, vector<2x32xf32>
    %cst_25 = arith.constant 3.000000e+01 : f32
    %53 = vector.broadcast %cst_25 : f32 to vector<2x32xf32>
    %54 = arith.minimumf %52, %53 : vector<2x32xf32>
    %55 = math.exp %54 : vector<2x32xf32>
    %cst_26 = arith.constant 2.000000e+00 : f32
    %56 = vector.broadcast %cst_26 : f32 to vector<2x32xf32>
    %57 = arith.addf %55, %56 : vector<2x32xf32>
    %58 = arith.mulf %55, %57 : vector<2x32xf32>
    %59 = arith.mulf %52, %58 : vector<2x32xf32>
    %cst_27 = arith.constant 2.000000e+00 : f32
    %60 = vector.broadcast %cst_27 : f32 to vector<2x32xf32>
    %61 = arith.addf %58, %60 : vector<2x32xf32>
    %62 = tpu.reciprocal %61 {approx = true} : vector<2x32xf32> -> vector<2x32xf32>
    %63 = arith.mulf %59, %62 : vector<2x32xf32>
    %64 = arith.truncf %63 : vector<2x32xf32> to vector<2x32xbf16>
    %c0_28 = arith.constant 0 : index
    %c0_29 = arith.constant 0 : index
    %65 = vector.load %arg8[%c0_28, %c0_29] : memref<32x16xbf16, #tpu.memory_space<vmem>>, vector<32x16xbf16>
    %cst_30 = arith.constant dense<0.000000e+00> : vector<2x16xf32>
    %66 = tpu.matmul %64, %65, %cst_30 {dimension_numbers = #tpu.dot_dimension_numbers<[1], [0], [0], [1], [0, 0, 1, 1], [], []>} : vector<2x32xbf16>, vector<32x16xbf16>, vector<2x16xf32> -> vector<2x16xf32>
    %c0_31 = arith.constant 0 : index
    %c0_32 = arith.constant 0 : index
    %67 = vector.load %arg9[%c0_31, %c0_32] : memref<1x16xf32, #tpu.memory_space<vmem>>, vector<1x16xf32>
    %68 = vector.broadcast %67 : vector<1x16xf32> to vector<2x16xf32>
    %69 = arith.addf %66, %68 : vector<2x16xf32>
    %70 = vector.shape_cast %69 : vector<2x16xf32> to vector<2x1x16xf32>
    %71 = vector.broadcast %70 : vector<2x1x16xf32> to vector<2x16x16xf32>
    %72 = arith.addf %51, %71 : vector<2x16x16xf32>
    %cst_33 = arith.constant 0.000000e+00 : f32
    %73 = vector.broadcast %cst_33 : f32 to vector<2x1x16xf32>
    %74 = tpu.concatenate %73, %72, %73 in 1 : vector<2x1x16xf32>, vector<2x16x16xf32>, vector<2x1x16xf32> -> vector<2x18x16xf32>
    %75 = vector.extract_strided_slice %74 {offsets = [0, 0, 0], sizes = [2, 16, 16], strides = [1, 1, 1]} : vector<2x18x16xf32> to vector<2x16x16xf32>
    %76 = vector.extract_strided_slice %74 {offsets = [0, 1, 0], sizes = [2, 16, 16], strides = [1, 1, 1]} : vector<2x18x16xf32> to vector<2x16x16xf32>
    %77 = vector.extract_strided_slice %74 {offsets = [0, 2, 0], sizes = [2, 16, 16], strides = [1, 1, 1]} : vector<2x18x16xf32> to vector<2x16x16xf32>
    %78 = tpu.concatenate %75, %76, %77 in 2 : vector<2x16x16xf32>, vector<2x16x16xf32>, vector<2x16x16xf32> -> vector<2x16x48xf32>
    %79 = vector.shape_cast %78 : vector<2x16x48xf32> to vector<32x48xf32>
    %80 = arith.truncf %79 : vector<32x48xf32> to vector<32x48xbf16>
    %c0_34 = arith.constant 0 : index
    %c0_35 = arith.constant 0 : index
    %81 = vector.load %arg10[%c0_34, %c0_35] : memref<48x16xbf16, #tpu.memory_space<vmem>>, vector<48x16xbf16>
    %cst_36 = arith.constant dense<0.000000e+00> : vector<32x16xf32>
    %82 = tpu.matmul %80, %81, %cst_36 {dimension_numbers = #tpu.dot_dimension_numbers<[1], [0], [0], [1], [0, 0, 1, 1], [], []>} : vector<32x48xbf16>, vector<48x16xbf16>, vector<32x16xf32> -> vector<32x16xf32>
    %c0_37 = arith.constant 0 : index
    %c0_38 = arith.constant 0 : index
    %83 = vector.load %arg11[%c0_37, %c0_38] : memref<1x16xf32, #tpu.memory_space<vmem>>, vector<1x16xf32>
    %84 = vector.broadcast %83 : vector<1x16xf32> to vector<32x16xf32>
    %85 = arith.addf %82, %84 : vector<32x16xf32>
    %86 = vector.shape_cast %85 : vector<32x16xf32> to vector<2x16x16xf32>
    %c0_39 = arith.constant 0 : index
    %c0_40 = arith.constant 0 : index
    %87 = vector.load %arg12[%c0_39, %c0_40] : memref<1x16xf32, #tpu.memory_space<vmem>>, vector<1x16xf32>
    %c0_41 = arith.constant 0 : index
    %c0_42 = arith.constant 0 : index
    %88 = vector.load %arg13[%c0_41, %c0_42] : memref<1x16xf32, #tpu.memory_space<vmem>>, vector<1x16xf32>
    %cst_43 = arith.constant dense<0.000000e+00> : vector<2x16xf32>
    %89 = vector.multi_reduction <add>, %86, %cst_43 [1] : vector<2x16x16xf32> to vector<2x16xf32>
    %cst_44 = arith.constant dense<0.000000e+00> : vector<2x16xf32>
    %90 = tpu.matmul %89, %0, %cst_44 {dimension_numbers = #tpu.dot_dimension_numbers<[1], [0], [0], [1], [0, 0, 1, 1], [], []>} : vector<2x16xf32>, vector<16x16xf32>, vector<2x16xf32> -> vector<2x16xf32>
    %cst_45 = arith.constant 3.125000e-02 : f32
    %91 = vector.broadcast %cst_45 : f32 to vector<2x16xf32>
    %92 = arith.mulf %90, %91 : vector<2x16xf32>
    %93 = vector.shape_cast %92 : vector<2x16xf32> to vector<2x1x16xf32>
    %94 = vector.broadcast %93 : vector<2x1x16xf32> to vector<2x16x16xf32>
    %95 = arith.subf %86, %94 : vector<2x16x16xf32>
    %96 = arith.mulf %95, %95 : vector<2x16x16xf32>
    %cst_46 = arith.constant dense<0.000000e+00> : vector<2x16xf32>
    %97 = vector.multi_reduction <add>, %96, %cst_46 [1] : vector<2x16x16xf32> to vector<2x16xf32>
    %cst_47 = arith.constant dense<0.000000e+00> : vector<2x16xf32>
    %98 = tpu.matmul %97, %0, %cst_47 {dimension_numbers = #tpu.dot_dimension_numbers<[1], [0], [0], [1], [0, 0, 1, 1], [], []>} : vector<2x16xf32>, vector<16x16xf32>, vector<2x16xf32> -> vector<2x16xf32>
    %cst_48 = arith.constant 3.125000e-02 : f32
    %99 = vector.broadcast %cst_48 : f32 to vector<2x16xf32>
    %100 = arith.mulf %98, %99 : vector<2x16xf32>
    %cst_49 = arith.constant 9.99999974E-6 : f32
    %101 = vector.broadcast %cst_49 : f32 to vector<2x16xf32>
    %102 = arith.addf %100, %101 : vector<2x16xf32>
    %103 = math.rsqrt %102 : vector<2x16xf32>
    %104 = vector.broadcast %87 : vector<1x16xf32> to vector<2x16xf32>
    %105 = arith.mulf %103, %104 : vector<2x16xf32>
    %106 = vector.shape_cast %105 : vector<2x16xf32> to vector<2x1x16xf32>
    %107 = vector.broadcast %106 : vector<2x1x16xf32> to vector<2x16x16xf32>
    %108 = arith.mulf %95, %107 : vector<2x16x16xf32>
    %109 = vector.shape_cast %88 : vector<1x16xf32> to vector<1x1x16xf32>
    %110 = vector.broadcast %109 : vector<1x1x16xf32> to vector<2x16x16xf32>
    %111 = arith.addf %108, %110 : vector<2x16x16xf32>
    %cst_50 = arith.constant 3.000000e+01 : f32
    %112 = vector.broadcast %cst_50 : f32 to vector<2x16x16xf32>
    %113 = arith.minimumf %111, %112 : vector<2x16x16xf32>
    %114 = math.exp %113 : vector<2x16x16xf32>
    %cst_51 = arith.constant 2.000000e+00 : f32
    %115 = vector.broadcast %cst_51 : f32 to vector<2x16x16xf32>
    %116 = arith.addf %114, %115 : vector<2x16x16xf32>
    %117 = arith.mulf %114, %116 : vector<2x16x16xf32>
    %118 = arith.mulf %111, %117 : vector<2x16x16xf32>
    %cst_52 = arith.constant 2.000000e+00 : f32
    %119 = vector.broadcast %cst_52 : f32 to vector<2x16x16xf32>
    %120 = arith.addf %117, %119 : vector<2x16x16xf32>
    %121 = tpu.reciprocal %120 {approx = true} : vector<2x16x16xf32> -> vector<2x16x16xf32>
    %122 = arith.mulf %118, %121 : vector<2x16x16xf32>
    %123 = vector.shape_cast %1 : vector<2x16x8xf32> to vector<32x8xf32>
    %124 = arith.truncf %123 : vector<32x8xf32> to vector<32x8xbf16>
    %c0_53 = arith.constant 0 : index
    %c0_54 = arith.constant 0 : index
    %125 = vector.load %arg14[%c0_53, %c0_54] : memref<8x16xbf16, #tpu.memory_space<vmem>>, vector<8x16xbf16>
    %cst_55 = arith.constant dense<0.000000e+00> : vector<32x16xf32>
    %126 = tpu.matmul %124, %125, %cst_55 {dimension_numbers = #tpu.dot_dimension_numbers<[1], [0], [0], [1], [0, 0, 1, 1], [], []>} : vector<32x8xbf16>, vector<8x16xbf16>, vector<32x16xf32> -> vector<32x16xf32>
    %c0_56 = arith.constant 0 : index
    %c0_57 = arith.constant 0 : index
    %127 = vector.load %arg15[%c0_56, %c0_57] : memref<1x16xf32, #tpu.memory_space<vmem>>, vector<1x16xf32>
    %128 = vector.broadcast %127 : vector<1x16xf32> to vector<32x16xf32>
    %129 = arith.addf %126, %128 : vector<32x16xf32>
    %130 = vector.shape_cast %129 : vector<32x16xf32> to vector<2x16x16xf32>
    %131 = arith.addf %122, %130 : vector<2x16x16xf32>
    %c0_58 = arith.constant 0 : index
    %c0_59 = arith.constant 0 : index
    %c0_60 = arith.constant 0 : index
    %132 = vector.load %arg16[%c0_58, %c0_59, %c0_60] : memref<2x16x16xf32, #tpu.memory_space<vmem>>, vector<2x16x16xf32>
    tpu.vector_store %arg16[%c0_58, %c0_59, %c0_60], %131 {strides = array<i32>} : memref<2x16x16xf32, #tpu.memory_space<vmem>>, vector<2x16x16xf32>,
    return
  }
  func.func @transform_0(%arg0: i32) -> (i32, i32, i32) {
    %c0_i32 = arith.constant 0 : i32
    %c0_i32_0 = arith.constant 0 : i32
    %c0_i32_1 = arith.constant 0 : i32
    return %arg0, %c0_i32, %c0_i32_0 : i32, i32, i32
  }
  func.func @transform_1(%arg0: i32) -> (i32, i32) {
    %c0_i32 = arith.constant 0 : i32
    %c0_i32_0 = arith.constant 0 : i32
    return %arg0, %c0_i32 : i32, i32
  }
  func.func @transform_2(%arg0: i32) -> (i32, i32) {
    %c0_i32 = arith.constant 0 : i32
    %c0_i32_0 = arith.constant 0 : i32
    %c0_i32_1 = arith.constant 0 : i32
    return %c0_i32, %c0_i32_0 : i32, i32
  }
  func.func @transform_3(%arg0: i32) -> (i32, i32) {
    %c0_i32 = arith.constant 0 : i32
    %c0_i32_0 = arith.constant 0 : i32
    %c0_i32_1 = arith.constant 0 : i32
    return %c0_i32, %c0_i32_0 : i32, i32
  }
  func.func @transform_4(%arg0: i32) -> (i32, i32) {
    %c0_i32 = arith.constant 0 : i32
    %c0_i32_0 = arith.constant 0 : i32
    %c0_i32_1 = arith.constant 0 : i32
    return %c0_i32, %c0_i32_0 : i32, i32
  }
  func.func @transform_5(%arg0: i32) -> (i32, i32) {
    %c0_i32 = arith.constant 0 : i32
    %c0_i32_0 = arith.constant 0 : i32
    %c0_i32_1 = arith.constant 0 : i32
    return %c0_i32, %c0_i32_0 : i32, i32
  }
  func.func @transform_6(%arg0: i32) -> (i32, i32) {
    %c0_i32 = arith.constant 0 : i32
    %c0_i32_0 = arith.constant 0 : i32
    %c0_i32_1 = arith.constant 0 : i32
    return %c0_i32, %c0_i32_0 : i32, i32
  }
  func.func @transform_7(%arg0: i32) -> (i32, i32) {
    %c0_i32 = arith.constant 0 : i32
    %c0_i32_0 = arith.constant 0 : i32
    %c0_i32_1 = arith.constant 0 : i32
    return %c0_i32, %c0_i32_0 : i32, i32
  }
  func.func @transform_8(%arg0: i32) -> (i32, i32) {
    %c0_i32 = arith.constant 0 : i32
    %c0_i32_0 = arith.constant 0 : i32
    %c0_i32_1 = arith.constant 0 : i32
    return %c0_i32, %c0_i32_0 : i32, i32
  }
  func.func @transform_9(%arg0: i32) -> (i32, i32) {
    %c0_i32 = arith.constant 0 : i32
    %c0_i32_0 = arith.constant 0 : i32
    %c0_i32_1 = arith.constant 0 : i32
    return %c0_i32, %c0_i32_0 : i32, i32
  }
  func.func @transform_10(%arg0: i32) -> (i32, i32) {
    %c0_i32 = arith.constant 0 : i32
    %c0_i32_0 = arith.constant 0 : i32
    %c0_i32_1 = arith.constant 0 : i32
    return %c0_i32, %c0_i32_0 : i32, i32
  }
  func.func @transform_11(%arg0: i32) -> (i32, i32) {
    %c0_i32 = arith.constant 0 : i32
    %c0_i32_0 = arith.constant 0 : i32
    %c0_i32_1 = arith.constant 0 : i32
    return %c0_i32, %c0_i32_0 : i32, i32
  }
  func.func @transform_12(%arg0: i32) -> (i32, i32) {
    %c0_i32 = arith.constant 0 : i32
    %c0_i32_0 = arith.constant 0 : i32
    %c0_i32_1 = arith.constant 0 : i32
    return %c0_i32, %c0_i32_0 : i32, i32
  }
  func.func @transform_13(%arg0: i32) -> (i32, i32) {
    %c0_i32 = arith.constant 0 : i32
    %c0_i32_0 = arith.constant 0 : i32
    %c0_i32_1 = arith.constant 0 : i32
    return %c0_i32, %c0_i32_0 : i32, i32
  }
  func.func @transform_14(%arg0: i32) -> (i32, i32) {
    %c0_i32 = arith.constant 0 : i32
    %c0_i32_0 = arith.constant 0 : i32
    %c0_i32_1 = arith.constant 0 : i32
    return %c0_i32, %c0_i32_0 : i32, i32
  }
  func.func @transform_15(%arg0: i32) -> (i32, i32, i32) {
    %c0_i32 = arith.constant 0 : i32
    %c0_i32_0 = arith.constant 0 : i32
    %c0_i32_1 = arith.constant 0 : i32
    return %arg0, %c0_i32, %c0_i32_0 : i32, i32, i32
  }
}

</mosaic_0001>

<llo_original>
// kernel: tpu_custom_call.1
$region0: #{tpu_custom_call.1}
  #allocation0 [shape = 'u32[]', space=smem, size = 0x4, offset = 0x4, fixed_abs, tag = 'smem constant byte address 0x4 - core index']
  #allocation1 [shape = 'u32[144,128]{1,0:T(1,128)}', space=vmem, size = 0x12000, scoped, tag = 'internal scratch']
  %s0 = inlined_call_operand.hbm [shape: f32[2,16,8], index: 0, kind: input, shape index: {}]
  %s1 = inlined_call_operand.hbm [shape: f32[2,32], index: 1, kind: input, shape index: {}]
  %s2 = inlined_call_operand.hbm [shape: f32[16,16], index: 2, kind: input, shape index: {}]
  %s3 = inlined_call_operand.hbm [shape: bf16[24,16], index: 3, kind: input, shape index: {}]
  %s4 = inlined_call_operand.hbm [shape: f32[1,16], index: 4, kind: input, shape index: {}]
  %s5 = inlined_call_operand.hbm [shape: f32[1,16], index: 5, kind: input, shape index: {}]
  %s6 = inlined_call_operand.hbm [shape: f32[1,16], index: 6, kind: input, shape index: {}]
  %s7 = inlined_call_operand.hbm [shape: bf16[32,16], index: 7, kind: input, shape index: {}]
  %s8 = inlined_call_operand.hbm [shape: f32[1,16], index: 8, kind: input, shape index: {}]
  %s9 = inlined_call_operand.hbm [shape: bf16[48,16], index: 9, kind: input, shape index: {}]
  %s10 = inlined_call_operand.hbm [shape: f32[1,16], index: 10, kind: input, shape index: {}]
  %s11 = inlined_call_operand.hbm [shape: f32[1,16], index: 11, kind: input, shape index: {}]
  %s12 = inlined_call_operand.hbm [shape: f32[1,16], index: 12, kind: input, shape index: {}]
  %s13 = inlined_call_operand.hbm [shape: bf16[8,16], index: 13, kind: input, shape index: {}]
  %s14 = inlined_call_operand.hbm [shape: f32[1,16], index: 14, kind: input, shape index: {}]
  %s15 = inlined_call_operand.hbm [shape: f32[2,16,16], index: 15, kind: output, shape index: {}]
  %s16 = sld [smem:[#allocation0]]
  $region130: #{tpu_custom_call.1} parent=0
    _
  %s18 = ssub.s32 1, %s16
  %s19 = scalar_select 0, %s18, %s16
  $region1: #{tpu_custom_call.1} parent=0
    #allocation2 [shape = 'u8[16384]{0}', space=vmem, size = 0x4000, scoped, tag = 'input window, operand 0, single buffered']
    #allocation3 [shape = 's32[1]{0}', space=sflag, size = 0x4, scoped, tag = 'scoped memory for tpu_custom_call.1']
    #allocation4 [shape = 's32[1]{0}', space=sflag, size = 0x4, scoped, tag = 'scoped memory for tpu_custom_call.1']
    #allocation5 [shape = 'u8[1024]{0}', space=vmem, size = 0x400, scoped, tag = 'input window, operand 1, single buffered']
    #allocation6 [shape = 's32[1]{0}', space=sflag, size = 0x4, scoped, tag = 'scoped memory for tpu_custom_call.1']
    #allocation7 [shape = 'u8[8192]{0}', space=vmem, size = 0x2000, scoped, tag = 'input window, operand 2, single buffered']
    #allocation8 [shape = 'u8[6144]{0}', space=vmem, size = 0x1800, scoped, tag = 'input window, operand 3, single buffered']
    #allocation9 [shape = 's32[1]{0}', space=sflag, size = 0x4, scoped, tag = 'scoped memory for tpu_custom_call.1']
    #allocation10 [shape = 'u8[512]{0}', space=vmem, size = 0x400, scoped, tag = 'input window, operand 4, single buffered']
    #allocation11 [shape = 'u8[512]{0}', space=vmem, size = 0x400, scoped, tag = 'input window, operand 5, single buffered']
    #allocation12 [shape = 's32[1]{0}', space=sflag, size = 0x4, scoped, tag = 'scoped memory for tpu_custom_call.1']
    #allocation13 [shape = 'u8[512]{0}', space=vmem, size = 0x400, scoped, tag = 'input window, operand 6, single buffered']
    #allocation14 [shape = 'u8[8192]{0}', space=vmem, size = 0x2000, scoped, tag = 'input window, operand 7, single buffered']
    #allocation15 [shape = 's32[1]{0}', space=sflag, size = 0x4, scoped, tag = 'scoped memory for tpu_custom_call.1']
    #allocation16 [shape = 'u8[512]{0}', space=vmem, size = 0x400, scoped, tag = 'input window, operand 8, single buffered']
    #allocation17 [shape = 'u8[12288]{0}', space=vmem, size = 0x3000, scoped, tag = 'input window, operand 9, single buffered']
    #allocation18 [shape = 's32[1]{0}', space=sflag, size = 0x4, scoped, tag = 'scoped memory for tpu_custom_call.1']
    #allocation19 [shape = 'u8[512]{0}', space=vmem, size = 0x400, scoped, tag = 'input window, operand 10, single buffered']
    #allocation20 [shape = 'u8[512]{0}', space=vmem, size = 0x400, scoped, tag = 'input window, operand 11, single buffered']
    #allocation21 [shape = 's32[1]{0}', space=sflag, size = 0x4, scoped, tag = 'scoped memory for tpu_custom_call.1']
    #allocation22 [shape = 'u8[512]{0}', space=vmem, size = 0x400, scoped, tag = 'input window, operand 12, single buffered']
    #allocation23 [shape = 'u8[2048]{0}', space=vmem, size = 0x800, scoped, tag = 'input window, operand 13, single buffered']
    #allocation24 [shape = 's32[1]{0}', space=sflag, size = 0x4, scoped, tag = 'scoped memory for tpu_custom_call.1']
    #allocation25 [shape = 'u8[512]{0}', space=vmem, size = 0x400, scoped, tag = 'input window, operand 14, single buffered']
    #allocation26 [shape = 'u8[16384]{0}', space=vmem, size = 0x4000, scoped, tag = 'output window, operand 0, single buffered']
    %20 = vsyncpa [#allocation3], 0
    %21 = vsyncpa [#allocation6], 0
    %22 = vsyncpa [#allocation9], 0
    %23 = vsyncpa [#allocation12], 0
    %24 = vsyncpa [#allocation15], 0
    %25 = vsyncpa [#allocation18], 0
    %26 = vsyncpa [#allocation21], 0
    %27 = vsyncpa [#allocation24], 0
    %28 = vsyncpa [#allocation4], 0
    // Predicated region
    $region2: #{tpu_custom_call.1} parent=1 // pred_check
      _
    $region3: #{tpu_custom_call.1} parent=1 // pred_check_branch
      %30 = sbr.rel (0) target = $region5
    $region4: #{tpu_custom_call.1} parent=1 // pred_region
      %s32 = ssub.s32 512, 512
      %33 = vsyncadd [#allocation3], %s32
      %s34 = sshll.u32 [#allocation2], 4
      %s35 = int_to_ptr.vmem [resolvable:$true] %s34
      %40 = dma.hbm_to_vmem [thread:$0]  %s0, 512, %s35, [#allocation3], 128, 128, 8
    $region5: #{tpu_custom_call.1} parent=1 // pred_fallthru
      _
    // Predicated region
    $region6: #{tpu_custom_call.1} parent=1 // pred_check
      _
    $region7: #{tpu_custom_call.1} parent=1 // pred_check_branch
      %42 = sbr.rel (0) target = $region9
    $region8: #{tpu_custom_call.1} parent=1 // pred_region
      %s44 = ssub.s32 32, 32
      %45 = vsyncadd [#allocation6], %s44
      %s47 = sshll.u32 [#allocation5], 4
      %s48 = int_to_ptr.vmem [resolvable:$true] %s47
      %50 = dma.hbm_to_vmem [thread:$0]  %s1, 32, %s48, [#allocation6]
    $region9: #{tpu_custom_call.1} parent=1 // pred_fallthru
      _
    // Predicated region
    $region10: #{tpu_custom_call.1} parent=1 // pred_check
      _
    $region11: #{tpu_custom_call.1} parent=1 // pred_check_branch
      %52 = sbr.rel (0) target = $region13
    $region12: #{tpu_custom_call.1} parent=1 // pred_region
      %s54 = ssub.s32 256, 256
      %55 = vsyncadd [#allocation6], %s54
      %s56 = sshll.u32 [#allocation7], 4
      %s57 = int_to_ptr.vmem [resolvable:$true] %s56
      %62 = dma.hbm_to_vmem [thread:$0]  %s2, 256, %s57, [#allocation6], 128, 128, 8
    $region13: #{tpu_custom_call.1} parent=1 // pred_fallthru
      _
    // Predicated region
    $region14: #{tpu_custom_call.1} parent=1 // pred_check
      _
    $region15: #{tpu_custom_call.1} parent=1 // pred_check_branch
      %64 = sbr.rel (0) target = $region17
    $region16: #{tpu_custom_call.1} parent=1 // pred_region
      %s66 = ssub.s32 192, 192
      %67 = vsyncadd [#allocation9], %s66
      %s68 = sshll.u32 [#allocation8], 4
      %s69 = int_to_ptr.vmem [resolvable:$true] %s68
      %74 = dma.hbm_to_vmem [thread:$0]  %s3, 192, %s69, [#allocation9], 64, 64, 4
    $region17: #{tpu_custom_call.1} parent=1 // pred_fallthru
      _
    // Predicated region
    $region18: #{tpu_custom_call.1} parent=1 // pred_check
      _
    $region19: #{tpu_custom_call.1} parent=1 // pred_check_branch
      %76 = sbr.rel (0) target = $region21
    $region20: #{tpu_custom_call.1} parent=1 // pred_region
      %s78 = ssub.s32 16, 16
      %79 = vsyncadd [#allocation9], %s78
      %s81 = sshll.u32 [#allocation10], 4
      %s82 = int_to_ptr.vmem [resolvable:$true] %s81
      %84 = dma.hbm_to_vmem [thread:$0]  %s4, 16, %s82, [#allocation9]
    $region21: #{tpu_custom_call.1} parent=1 // pred_fallthru
      _
    // Predicated region
    $region22: #{tpu_custom_call.1} parent=1 // pred_check
      _
    $region23: #{tpu_custom_call.1} parent=1 // pred_check_branch
      %86 = sbr.rel (0) target = $region25
    $region24: #{tpu_custom_call.1} parent=1 // pred_region
      %s88 = ssub.s32 16, 16
      %89 = vsyncadd [#allocation12], %s88
      %s91 = sshll.u32 [#allocation11], 4
      %s92 = int_to_ptr.vmem [resolvable:$true] %s91
      %94 = dma.hbm_to_vmem [thread:$0]  %s5, 16, %s92, [#allocation12]
    $region25: #{tpu_custom_call.1} parent=1 // pred_fallthru
      _
    // Predicated region
    $region26: #{tpu_custom_call.1} parent=1 // pred_check
      _
    $region27: #{tpu_custom_call.1} parent=1 // pred_check_branch
      %96 = sbr.rel (0) target = $region29
    $region28: #{tpu_custom_call.1} parent=1 // pred_region
      %s98 = ssub.s32 16, 16
      %99 = vsyncadd [#allocation12], %s98
      %s101 = sshll.u32 [#allocation13], 4
      %s102 = int_to_ptr.vmem [resolvable:$true] %s101
      %104 = dma.hbm_to_vmem [thread:$0]  %s6, 16, %s102, [#allocation12]
    $region29: #{tpu_custom_call.1} parent=1 // pred_fallthru
      _
    // Predicated region
    $region30: #{tpu_custom_call.1} parent=1 // pred_check
      _
    $region31: #{tpu_custom_call.1} parent=1 // pred_check_branch
      %106 = sbr.rel (0) target = $region33
    $region32: #{tpu_custom_call.1} parent=1 // pred_region
      %s108 = ssub.s32 256, 256
      %109 = vsyncadd [#allocation15], %s108
      %s110 = sshll.u32 [#allocation14], 4
      %s111 = int_to_ptr.vmem [resolvable:$true] %s110
      %116 = dma.hbm_to_vmem [thread:$0]  %s7, 256, %s111, [#allocation15], 64, 64, 4
    $region33: #{tpu_custom_call.1} parent=1 // pred_fallthru
      _
    // Predicated region
    $region34: #{tpu_custom_call.1} parent=1 // pred_check
      _
    $region35: #{tpu_custom_call.1} parent=1 // pred_check_branch
      %118 = sbr.rel (0) target = $region37
    $region36: #{tpu_custom_call.1} parent=1 // pred_region
      %s120 = ssub.s32 16, 16
      %121 = vsyncadd [#allocation15], %s120
      %s123 = sshll.u32 [#allocation16], 4
      %s124 = int_to_ptr.vmem [resolvable:$true] %s123
      %126 = dma.hbm_to_vmem [thread:$0]  %s8, 16, %s124, [#allocation15]
    $region37: #{tpu_custom_call.1} parent=1 // pred_fallthru
      _
    // Predicated region
    $region38: #{tpu_custom_call.1} parent=1 // pred_check
      _
    $region39: #{tpu_custom_call.1} parent=1 // pred_check_branch
      %128 = sbr.rel (0) target = $region41
    $region40: #{tpu_custom_call.1} parent=1 // pred_region
      %s130 = ssub.s32 384, 384
      %131 = vsyncadd [#allocation18], %s130
      %s132 = sshll.u32 [#allocation17], 4
      %s133 = int_to_ptr.vmem [resolvable:$true] %s132
      %138 = dma.hbm_to_vmem [thread:$0]  %s9, 384, %s133, [#allocation18], 64, 64, 4
    $region41: #{tpu_custom_call.1} parent=1 // pred_fallthru
      _
    // Predicated region
    $region42: #{tpu_custom_call.1} parent=1 // pred_check
      _
    $region43: #{tpu_custom_call.1} parent=1 // pred_check_branch
      %140 = sbr.rel (0) target = $region45
    $region44: #{tpu_custom_call.1} parent=1 // pred_region
      %s142 = ssub.s32 16, 16
      %143 = vsyncadd [#allocation18], %s142
      %s145 = sshll.u32 [#allocation19], 4
      %s146 = int_to_ptr.vmem [resolvable:$true] %s145
      %148 = dma.hbm_to_vmem [thread:$0]  %s10, 16, %s146, [#allocation18]
    $region45: #{tpu_custom_call.1} parent=1 // pred_fallthru
      _
    // Predicated region
    $region46: #{tpu_custom_call.1} parent=1 // pred_check
      _
    $region47: #{tpu_custom_call.1} parent=1 // pred_check_branch
      %150 = sbr.rel (0) target = $region49
    $region48: #{tpu_custom_call.1} parent=1 // pred_region
      %s152 = ssub.s32 16, 16
      %153 = vsyncadd [#allocation21], %s152
      %s155 = sshll.u32 [#allocation20], 4
      %s156 = int_to_ptr.vmem [resolvable:$true] %s155
      %158 = dma.hbm_to_vmem [thread:$0]  %s11, 16, %s156, [#allocation21]
    $region49: #{tpu_custom_call.1} parent=1 // pred_fallthru
      _
    // Predicated region
    $region50: #{tpu_custom_call.1} parent=1 // pred_check
      _
    $region51: #{tpu_custom_call.1} parent=1 // pred_check_branch
      %160 = sbr.rel (0) target = $region53
    $region52: #{tpu_custom_call.1} parent=1 // pred_region
      %s162 = ssub.s32 16, 16
      %163 = vsyncadd [#allocation21], %s162
      %s165 = sshll.u32 [#allocation22], 4
      %s166 = int_to_ptr.vmem [resolvable:$true] %s165
      %168 = dma.hbm_to_vmem [thread:$0]  %s12, 16, %s166, [#allocation21]
    $region53: #{tpu_custom_call.1} parent=1 // pred_fallthru
      _
    // Predicated region
    $region54: #{tpu_custom_call.1} parent=1 // pred_check
      _
    $region55: #{tpu_custom_call.1} parent=1 // pred_check_branch
      %170 = sbr.rel (0) target = $region57
    $region56: #{tpu_custom_call.1} parent=1 // pred_region
      %s172 = ssub.s32 64, 64
      %173 = vsyncadd [#allocation24], %s172
      %s175 = sshll.u32 [#allocation23], 4
      %s176 = int_to_ptr.vmem [resolvable:$true] %s175
      %178 = dma.hbm_to_vmem [thread:$0]  %s13, 64, %s176, [#allocation24]
    $region57: #{tpu_custom_call.1} parent=1 // pred_fallthru
      _
    // Predicated region
    $region58: #{tpu_custom_call.1} parent=1 // pred_check
      _
    $region59: #{tpu_custom_call.1} parent=1 // pred_check_branch
      %180 = sbr.rel (0) target = $region61
    $region60: #{tpu_custom_call.1} parent=1 // pred_region
      %s182 = ssub.s32 16, 16
      %183 = vsyncadd [#allocation24], %s182
      %s185 = sshll.u32 [#allocation25], 4
      %s186 = int_to_ptr.vmem [resolvable:$true] %s185
      %188 = dma.hbm_to_vmem [thread:$0]  %s14, 16, %s186, [#allocation24]
    $region61: #{tpu_custom_call.1} parent=1 // pred_fallthru
      _
    // Predicated region
    $region62: #{tpu_custom_call.1} parent=1 // pred_check
      _
    $region63: #{tpu_custom_call.1} parent=1 // pred_check_branch
      %190 = sbr.rel (0) target = $region65
    $region64: #{tpu_custom_call.1} parent=1 // pred_region
      %191 = dma.done [#allocation3], 512
    $region65: #{tpu_custom_call.1} parent=1 // pred_fallthru
      _
    // Predicated region
    $region66: #{tpu_custom_call.1} parent=1 // pred_check
      _
    $region67: #{tpu_custom_call.1} parent=1 // pred_check_branch
      %193 = sbr.rel (0) target = $region69
    $region68: #{tpu_custom_call.1} parent=1 // pred_region
      %194 = dma.done [#allocation6], 32
    $region69: #{tpu_custom_call.1} parent=1 // pred_fallthru
      _
    // Predicated region
    $region70: #{tpu_custom_call.1} parent=1 // pred_check
      _
    $region71: #{tpu_custom_call.1} parent=1 // pred_check_branch
      %196 = sbr.rel (0) target = $region73
    $region72: #{tpu_custom_call.1} parent=1 // pred_region
      %197 = dma.done [#allocation6], 256
    $region73: #{tpu_custom_call.1} parent=1 // pred_fallthru
      _
    // Predicated region
    $region74: #{tpu_custom_call.1} parent=1 // pred_check
      _
    $region75: #{tpu_custom_call.1} parent=1 // pred_check_branch
      %199 = sbr.rel (0) target = $region77
    $region76: #{tpu_custom_call.1} parent=1 // pred_region
      %200 = dma.done [#allocation9], 192
    $region77: #{tpu_custom_call.1} parent=1 // pred_fallthru
      _
    // Predicated region
    $region78: #{tpu_custom_call.1} parent=1 // pred_check
      _
    $region79: #{tpu_custom_call.1} parent=1 // pred_check_branch
      %202 = sbr.rel (0) target = $region81
    $region80: #{tpu_custom_call.1} parent=1 // pred_region
      %203 = dma.done [#allocation9], 16
    $region81: #{tpu_custom_call.1} parent=1 // pred_fallthru
      _
    // Predicated region
    $region82: #{tpu_custom_call.1} parent=1 // pred_check
      _
    $region83: #{tpu_custom_call.1} parent=1 // pred_check_branch
      %205 = sbr.rel (0) target = $region85
    $region84: #{tpu_custom_call.1} parent=1 // pred_region
      %206 = dma.done [#allocation12], 16
    $region85: #{tpu_custom_call.1} parent=1 // pred_fallthru
      _
    // Predicated region
    $region86: #{tpu_custom_call.1} parent=1 // pred_check
      _
    $region87: #{tpu_custom_call.1} parent=1 // pred_check_branch
      %208 = sbr.rel (0) target = $region89
    $region88: #{tpu_custom_call.1} parent=1 // pred_region
      %209 = dma.done [#allocation12], 16
    $region89: #{tpu_custom_call.1} parent=1 // pred_fallthru
      _
    // Predicated region
    $region90: #{tpu_custom_call.1} parent=1 // pred_check
      _
    $region91: #{tpu_custom_call.1} parent=1 // pred_check_branch
      %211 = sbr.rel (0) target = $region93
    $region92: #{tpu_custom_call.1} parent=1 // pred_region
      %212 = dma.done [#allocation15], 256
    $region93: #{tpu_custom_call.1} parent=1 // pred_fallthru
      _
    // Predicated region
    $region94: #{tpu_custom_call.1} parent=1 // pred_check
      _
    $region95: #{tpu_custom_call.1} parent=1 // pred_check_branch
      %214 = sbr.rel (0) target = $region97
    $region96: #{tpu_custom_call.1} parent=1 // pred_region
      %215 = dma.done [#allocation15], 16
    $region97: #{tpu_custom_call.1} parent=1 // pred_fallthru
      _
    // Predicated region
    $region98: #{tpu_custom_call.1} parent=1 // pred_check
      _
    $region99: #{tpu_custom_call.1} parent=1 // pred_check_branch
      %217 = sbr.rel (0) target = $region101
    $region100: #{tpu_custom_call.1} parent=1 // pred_region
      %218 = dma.done [#allocation18], 384
    $region101: #{tpu_custom_call.1} parent=1 // pred_fallthru
      _
    // Predicated region
    $region102: #{tpu_custom_call.1} parent=1 // pred_check
      _
    $region103: #{tpu_custom_call.1} parent=1 // pred_check_branch
      %220 = sbr.rel (0) target = $region105
    $region104: #{tpu_custom_call.1} parent=1 // pred_region
      %221 = dma.done [#allocation18], 16
    $region105: #{tpu_custom_call.1} parent=1 // pred_fallthru
      _
    // Predicated region
    $region106: #{tpu_custom_call.1} parent=1 // pred_check
      _
    $region107: #{tpu_custom_call.1} parent=1 // pred_check_branch
      %223 = sbr.rel (0) target = $region109
    $region108: #{tpu_custom_call.1} parent=1 // pred_region
      %224 = dma.done [#allocation21], 16
    $region109: #{tpu_custom_call.1} parent=1 // pred_fallthru
      _
    // Predicated region
    $region110: #{tpu_custom_call.1} parent=1 // pred_check
      _
    $region111: #{tpu_custom_call.1} parent=1 // pred_check_branch
      %226 = sbr.rel (0) target = $region113
    $region112: #{tpu_custom_call.1} parent=1 // pred_region
      %227 = dma.done [#allocation21], 16
    $region113: #{tpu_custom_call.1} parent=1 // pred_fallthru
      _
    // Predicated region
    $region114: #{tpu_custom_call.1} parent=1 // pred_check
      _
    $region115: #{tpu_custom_call.1} parent=1 // pred_check_branch
      %229 = sbr.rel (0) target = $region117
    $region116: #{tpu_custom_call.1} parent=1 // pred_region
      %230 = dma.done [#allocation24], 64
    $region117: #{tpu_custom_call.1} parent=1 // pred_fallthru
      _
    // Predicated region
    $region118: #{tpu_custom_call.1} parent=1 // pred_check
      _
    $region119: #{tpu_custom_call.1} parent=1 // pred_check_branch
      %232 = sbr.rel (0) target = $region121
    $region120: #{tpu_custom_call.1} parent=1 // pred_region
      %233 = dma.done [#allocation24], 16
    $region121: #{tpu_custom_call.1} parent=1 // pred_fallthru
      _
    %v235 = vld [vmem:[#allocation7] sm:$0xff]
    %v236 = vld [vmem:[#allocation7 + $0x8] sm:$0xff]
    %v237 = vld [vmem:[#allocation2] sm:$0xff]
    %v238 = vld [vmem:[#allocation2 + $0x8] sm:$0xff]
    %v239 = vld [vmem:[#allocation2 + $0x10] sm:$0xff]
    %v240 = vld [vmem:[#allocation2 + $0x18] sm:$0xff]
    %vm245 = vcmask 1040384
    %v246 = vrot.slane %v237, 7
    %v247 = vrot.slane %v238, 7
    %v248 = vsel %vm245, %v246, %v247
    %v249 = vrot.slane %v239, 7
    %v250 = vrot.slane %v240, 7
    %v251 = vsel %vm245, %v249, %v250
    %v258 = vsel %vm245, 0.0, %v246
    %v259 = vsel %vm245, 0.0, %v249
    %v260 = vsel %vm245, %v247, 0.0
    %v261 = vsel %vm245, %v250, 0.0
    %vm266 = vcmask 1046528
    %v267 = vrot.slane %v258, 1
    %v268 = vrot.slane %v248, 1
    %v269 = vsel %vm266, %v267, %v268
    %v270 = vrot.slane %v260, 1
    %v271 = vsel %vm266, %v268, %v270
    %v272 = vrot.slane %v259, 1
    %v273 = vrot.slane %v251, 1
    %v274 = vsel %vm266, %v272, %v273
    %v275 = vrot.slane %v261, 1
    %v276 = vsel %vm266, %v273, %v275
    %277 = vrot.lane.b32.xlu0 %v269, 8
    %v278 = vpop.permute.xlu0 %277
    %279 = vrot.lane.b32.xlu0 %v271, 8
    %v280 = vpop.permute.xlu0 %279
    %281 = vrot.lane.b32.xlu0 %v274, 8
    %v282 = vpop.permute.xlu0 %281
    %283 = vrot.lane.b32.xlu0 %v276, 8
    %v284 = vpop.permute.xlu0 %283
    %vm289 = vcmask 1045504
    %v290 = vrot.slane %v258, 2
    %v291 = vrot.slane %v248, 2
    %v292 = vsel %vm289, %v290, %v291
    %v293 = vrot.slane %v260, 2
    %v294 = vsel %vm289, %v291, %v293
    %v295 = vrot.slane %v259, 2
    %v296 = vrot.slane %v251, 2
    %v297 = vsel %vm289, %v295, %v296
    %v298 = vrot.slane %v261, 2
    %v299 = vsel %vm289, %v296, %v298
    %300 = vrot.lane.b32.xlu0 %v292, 16
    %v301 = vpop.permute.xlu0 %300
    %302 = vrot.lane.b32.xlu0 %v294, 16
    %v303 = vpop.permute.xlu0 %302
    %304 = vrot.lane.b32.xlu0 %v297, 16
    %v305 = vpop.permute.xlu0 %304
    %306 = vrot.lane.b32.xlu0 %v299, 16
    %v307 = vpop.permute.xlu0 %306
    %vm312 = vcmask 64512
    %v313 = vsel %vm312, %v258, %v278
    %v314 = vsel %vm312, %v248, %v280
    %v315 = vsel %vm312, %v259, %v282
    %v316 = vsel %vm312, %v251, %v284
    %vm317 = vcmask 130048
    %v318 = vsel %vm317, %v313, %v301
    %v319 = vsel %vm317, %v314, %v303
    %v320 = vsel %vm317, %v315, %v305
    %v321 = vsel %vm317, %v316, %v307
    %v322 = vpack.c.bf16 %v319, %v318
    %v323 = vpack.c.bf16 %v321, %v320
    %v324 = vld [vmem:[#allocation8] sm:$0xf]
    %v325 = vld [vmem:[#allocation8 + $0x4] sm:$0xf]
    %v326 = vld [vmem:[#allocation8 + $0x8] sm:$0xf]
    %v327 = vld [vmem:[#allocation10] sm:$0x1]
    %v329 = vlaneseq
    %v330 = vshrl.u32 %v329, 7
    %v331 = vsub.s32 0, %v330
    %v332 = vrot.slane %v327, %v331
    %v337 = vunpack.c.l.b16 %v324
    %v338 = vunpack.c.l.b16 %v325
    %v339 = vunpack.c.l.b16 %v326
    %v340 = vpack.c.b16 %v338, %v337
    %v341 = vpack.c.b16 %v339, %v339
    %vm343 = vcmask 195584
    %v345 = vsel %vm343, %v322, 0
    %v348 = vsel %vm343, %v323, 0
    %vm350 = vcmask 1043456
    %v352 = vsel %vm350, %v341, 0
    %354 = vmatprep.subr.bf16.mxu0 0
    %355 = vmatpush1.bf16.msra.mxu0 %v340
    %356 = vmatprep.subr.bf16.mxu0 0
    %357 = vmatpush1.bf16.msra.mxu0 %v352
    %358 = vmatprep.subr.bf16.mxu0 0
    %359 = vmatpush1.bf16.msra.mxu0 0
    %360 = vmatprep.subr.bf16.mxu0 0
    %361 = vmatpush1.bf16.msra.mxu0 0
    %362 = vmatprep.subr.bf16.mxu0 0
    %363 = vmatpush1.bf16.msra.mxu0 0
    %364 = vmatprep.subr.bf16.mxu0 0
    %365 = vmatpush1.bf16.msra.mxu0 0
    %366 = vmatprep.subr.bf16.mxu0 0
    %367 = vmatpush1.bf16.msra.mxu0 0
    %368 = vmatprep.subr.bf16.mxu0 0
    %369 = vmatpush1.bf16.msra.mxu0 0
    %370 = vmatprep.subr.bf16.mxu0 0
    %371 = vmatpush1.bf16.msra.mxu0 0
    %372 = vmatprep.subr.bf16.mxu0 0
    %373 = vmatpush1.bf16.msra.mxu0 0
    %374 = vmatprep.subr.bf16.mxu0 0
    %375 = vmatpush1.bf16.msra.mxu0 0
    %376 = vmatprep.subr.bf16.mxu0 0
    %377 = vmatpush1.bf16.msra.mxu0 0
    %378 = vmatprep.subr.bf16.mxu0 0
    %379 = vmatpush1.bf16.msra.mxu0 0
    %380 = vmatprep.subr.bf16.mxu0 0
    %381 = vmatpush1.bf16.msra.mxu0 0
    %382 = vmatprep.subr.bf16.mxu0 0
    %383 = vmatpush1.bf16.msra.mxu0 0
    %384 = vmatprep.subr.bf16.mxu0 0
    %385 = vmatpush1.bf16.msra.mxu0 0
    %386 = vmatprep.mubr.bf16.mxu0 0
    %387 = vmatmul.mubr.bf16.gmra.mrb[0].mxu0 %v345
    %v388 = vpop.f32.mrb[0].mxu0
    %v389 = vadd.f32 %v332, %v388
    %v390 = vpop.f32.mrb[0].mxu0
    %v391 = vpop.f32.mrb[0].mxu0
    %v392 = vadd.f32 %v332, %v391
    %v393 = vpop.f32.mrb[0].mxu0
    %394 = vmatprep.mubr.bf16.mxu0 0
    %395 = vmatmul.mubr.bf16.gmra.mrb[0].mxu0 %v348
    %v396 = vpop.f32.mrb[0].mxu0
    %v397 = vadd.f32 %v332, %v396
    %v398 = vpop.f32.mrb[0].mxu0
    %v399 = vpop.f32.mrb[0].mxu0
    %v400 = vadd.f32 %v332, %v399
    %v401 = vpop.f32.mrb[0].mxu0
    %402 = vdwg.mxu0
    %v403 = vld [vmem:[#allocation11] sm:$0x1]
    %v404 = vld [vmem:[#allocation13] sm:$0x1]
    %v405 = vsel %vm317, %v389, 0.0
    %v406 = vsel %vm317, %v392, 0.0
    %v407 = vadd.f32 %v405, %v406
    %v408 = vrot.slane %v407, 4
    %v409 = vadd.f32 %v407, %v408
    %v410 = vrot.slane %v409, 2
    %v411 = vadd.f32 %v409, %v410
    %v412 = vrot.slane %v411, 1
    %v413 = vadd.f32 %v411, %v412
    %v414 = vsel %vm317, %v397, 0.0
    %v415 = vsel %vm317, %v400, 0.0
    %v416 = vadd.f32 %v414, %v415
    %v417 = vrot.slane %v416, 4
    %v418 = vadd.f32 %v416, %v417
    %v419 = vrot.slane %v418, 2
    %v420 = vadd.f32 %v418, %v419
    %v421 = vrot.slane %v420, 1
    %v422 = vadd.f32 %v420, %v421
    %vm425 = vcmask 1041409
    %v426 = vsel %vm425, %v422, %v413
    %v427 = vsel %vm317, %v426, 0
    %429 = vmatprep.subr.mxu0 0.0
    %430 = vmatpush1.msra.mxu0 %v235
    %431 = vmatprep.subr.mxu0 0.0
    %432 = vmatpush1.msra.mxu0 %v236
    %433 = vmatprep.subr.mxu0 0.0
    %434 = vmatpush1.msra.mxu0 0.0
    %435 = vmatprep.subr.mxu0 0.0
    %436 = vmatpush1.msra.mxu0 0.0
    %437 = vmatprep.subr.mxu0 0.0
    %438 = vmatpush1.msra.mxu0 0.0
    %439 = vmatprep.subr.mxu0 0.0
    %440 = vmatpush1.msra.mxu0 0.0
    %441 = vmatprep.subr.mxu0 0.0
    %442 = vmatpush1.msra.mxu0 0.0
    %443 = vmatprep.subr.mxu0 0.0
    %444 = vmatpush1.msra.mxu0 0.0
    %445 = vmatprep.subr.mxu0 0.0
    %446 = vmatpush1.msra.mxu0 0.0
    %447 = vmatprep.subr.mxu0 0.0
    %448 = vmatpush1.msra.mxu0 0.0
    %449 = vmatprep.subr.mxu0 0.0
    %450 = vmatpush1.msra.mxu0 0.0
    %451 = vmatprep.subr.mxu0 0.0
    %452 = vmatpush1.msra.mxu0 0.0
    %453 = vmatprep.subr.mxu0 0.0
    %454 = vmatpush1.msra.mxu0 0.0
    %455 = vmatprep.subr.mxu0 0.0
    %456 = vmatpush1.msra.mxu0 0.0
    %457 = vmatprep.subr.mxu0 0.0
    %458 = vmatpush1.msra.mxu0 0.0
    %459 = vmatprep.subr.mxu0 0.0
    %460 = vmatpush1.msra.mxu0 0.0
    %461 = vmatprep.subr.mxu0 0.0
    %462 = vmatpush1.msra.mxu0 0.0
    %463 = vmatprep.subr.mxu0 0.0
    %464 = vmatpush1.msra.mxu0 0.0
    %465 = vmatprep.subr.mxu0 0.0
    %466 = vmatpush1.msra.mxu0 0.0
    %467 = vmatprep.subr.mxu0 0.0
    %468 = vmatpush1.msra.mxu0 0.0
    %469 = vmatprep.subr.mxu0 0.0
    %470 = vmatpush1.msra.mxu0 0.0
    %471 = vmatprep.subr.mxu0 0.0
    %472 = vmatpush1.msra.mxu0 0.0
    %473 = vmatprep.subr.mxu0 0.0
    %474 = vmatpush1.msra.mxu0 0.0
    %475 = vmatprep.subr.mxu0 0.0
    %476 = vmatpush1.msra.mxu0 0.0
    %477 = vmatprep.subr.mxu0 0.0
    %478 = vmatpush1.msra.mxu0 0.0
    %479 = vmatprep.subr.mxu0 0.0
    %480 = vmatpush1.msra.mxu0 0.0
    %481 = vmatprep.subr.mxu0 0.0
    %482 = vmatpush1.msra.mxu0 0.0
    %483 = vmatprep.subr.mxu0 0.0
    %484 = vmatpush1.msra.mxu0 0.0
    %485 = vmatprep.subr.mxu0 0.0
    %486 = vmatpush1.msra.mxu0 0.0
    %487 = vmatprep.subr.mxu0 0.0
    %488 = vmatpush1.msra.mxu0 0.0
    %489 = vmatprep.subr.mxu0 0.0
    %490 = vmatpush1.msra.mxu0 0.0
    %491 = vmatprep.subr.mxu0 0.0
    %492 = vmatpush1.msra.mxu0 0.0
    %493 = vmatprep.mubr.f32.mxu0 0.0
    %494 = vmatmul.mubr.f32.gmra.mrb[0].mxu0 %v427
    %v495 = vpop.f32.mrb[0].mxu0
    %v496 = vadd.f32 0.0, %v495
    %v497 = vpop.f32.mrb[0].mxu0
    %498 = vdwg.mxu0
    %v499 = vmul.f32 %v496, 0.03125
    %v502 = vunpack.c.l.s4 1966171168
    %v503 = vunpack.c.0.s8 %v502
    %v504 = vlaneseq
    %v505 = vshrl.u32 %v504, 7
    %v506 = vsub.s32 %v503, %v505
    %v507 = vrot.slane %v499, %v506
    %v508 = vcombine.high %v507, %v507
    %v510 = vunpack.c.l.s4 1966171168
    %v511 = vunpack.c.0.s8 %v510
    %v512 = vlaneseq
    %v513 = vshrl.u32 %v512, 7
    %v514 = vsub.s32 %v511, %v513
    %v515 = vrot.slane %v507, %v514
    %v517 = vunpack.c.l.s4 1966171168
    %v518 = vunpack.c.0.s8 %v517
    %v519 = vlaneseq
    %v520 = vshrl.u32 %v519, 7
    %v521 = vsub.s32 %v518, %v520
    %v522 = vrot.slane %v508, %v521
    %v523 = vlaneseq
    %v524 = vshrl.u32 %v523, 7
    %v525 = vsub.s32 0, %v524
    %v526 = vrot.slane %v515, %v525
    %v527 = vlaneseq
    %v528 = vshrl.u32 %v527, 7
    %v529 = vsub.s32 0, %v528
    %v530 = vrot.slane %v522, %v529
    %v533 = vsub.f32 %v389, %v526
    %v534 = vsub.f32 %v392, %v526
    %v535 = vsub.f32 %v397, %v530
    %v536 = vsub.f32 %v400, %v530
    %v537 = vmul.f32 %v533, %v533
    %v538 = vmul.f32 %v534, %v534
    %v539 = vmul.f32 %v535, %v535
    %v540 = vmul.f32 %v536, %v536
    %v541 = vsel %vm317, %v537, 0.0
    %v542 = vsel %vm317, %v538, 0.0
    %v543 = vadd.f32 %v541, %v542
    %v544 = vrot.slane %v543, 4
    %v545 = vadd.f32 %v543, %v544
    %v546 = vrot.slane %v545, 2
    %v547 = vadd.f32 %v545, %v546
    %v548 = vrot.slane %v547, 1
    %v549 = vadd.f32 %v547, %v548
    %v550 = vsel %vm317, %v539, 0.0
    %v551 = vsel %vm317, %v540, 0.0
    %v552 = vadd.f32 %v550, %v551
    %v553 = vrot.slane %v552, 4
    %v554 = vadd.f32 %v552, %v553
    %v555 = vrot.slane %v554, 2
    %v556 = vadd.f32 %v554, %v555
    %v557 = vrot.slane %v556, 1
    %v558 = vadd.f32 %v556, %v557
    %v561 = vsel %vm425, %v558, %v549
    %v562 = vsel %vm317, %v561, 0
    %564 = vmatprep.subr.mxu0 0.0
    %565 = vmatpush1.msra.mxu0 %v235
    %566 = vmatprep.subr.mxu0 0.0
    %567 = vmatpush1.msra.mxu0 %v236
    %568 = vmatprep.subr.mxu0 0.0
    %569 = vmatpush1.msra.mxu0 0.0
    %570 = vmatprep.subr.mxu0 0.0
    %571 = vmatpush1.msra.mxu0 0.0
    %572 = vmatprep.subr.mxu0 0.0
    %573 = vmatpush1.msra.mxu0 0.0
    %574 = vmatprep.subr.mxu0 0.0
    %575 = vmatpush1.msra.mxu0 0.0
    %576 = vmatprep.subr.mxu0 0.0
    %577 = vmatpush1.msra.mxu0 0.0
    %578 = vmatprep.subr.mxu0 0.0
    %579 = vmatpush1.msra.mxu0 0.0
    %580 = vmatprep.subr.mxu0 0.0
    %581 = vmatpush1.msra.mxu0 0.0
    %582 = vmatprep.subr.mxu0 0.0
    %583 = vmatpush1.msra.mxu0 0.0
    %584 = vmatprep.subr.mxu0 0.0
    %585 = vmatpush1.msra.mxu0 0.0
    %586 = vmatprep.subr.mxu0 0.0
    %587 = vmatpush1.msra.mxu0 0.0
    %588 = vmatprep.subr.mxu0 0.0
    %589 = vmatpush1.msra.mxu0 0.0
    %590 = vmatprep.subr.mxu0 0.0
    %591 = vmatpush1.msra.mxu0 0.0
    %592 = vmatprep.subr.mxu0 0.0
    %593 = vmatpush1.msra.mxu0 0.0
    %594 = vmatprep.subr.mxu0 0.0
    %595 = vmatpush1.msra.mxu0 0.0
    %596 = vmatprep.subr.mxu0 0.0
    %597 = vmatpush1.msra.mxu0 0.0
    %598 = vmatprep.subr.mxu0 0.0
    %599 = vmatpush1.msra.mxu0 0.0
    %600 = vmatprep.subr.mxu0 0.0
    %601 = vmatpush1.msra.mxu0 0.0
    %602 = vmatprep.subr.mxu0 0.0
    %603 = vmatpush1.msra.mxu0 0.0
    %604 = vmatprep.subr.mxu0 0.0
    %605 = vmatpush1.msra.mxu0 0.0
    %606 = vmatprep.subr.mxu0 0.0
    %607 = vmatpush1.msra.mxu0 0.0
    %608 = vmatprep.subr.mxu0 0.0
    %609 = vmatpush1.msra.mxu0 0.0
    %610 = vmatprep.subr.mxu0 0.0
    %611 = vmatpush1.msra.mxu0 0.0
    %612 = vmatprep.subr.mxu0 0.0
    %613 = vmatpush1.msra.mxu0 0.0
    %614 = vmatprep.subr.mxu0 0.0
    %615 = vmatpush1.msra.mxu0 0.0
    %616 = vmatprep.subr.mxu0 0.0
    %617 = vmatpush1.msra.mxu0 0.0
    %618 = vmatprep.subr.mxu0 0.0
    %619 = vmatpush1.msra.mxu0 0.0
    %620 = vmatprep.subr.mxu0 0.0
    %621 = vmatpush1.msra.mxu0 0.0
    %622 = vmatprep.subr.mxu0 0.0
    %623 = vmatpush1.msra.mxu0 0.0
    %624 = vmatprep.subr.mxu0 0.0
    %625 = vmatpush1.msra.mxu0 0.0
    %626 = vmatprep.subr.mxu0 0.0
    %627 = vmatpush1.msra.mxu0 0.0
    %628 = vmatprep.mubr.f32.mxu0 0.0
    %629 = vmatmul.mubr.f32.gmra.mrb[0].mxu0 %v562
    %v630 = vpop.f32.mrb[0].mxu0
    %v631 = vadd.f32 0.0, %v630
    %v632 = vpop.f32.mrb[0].mxu0
    %633 = vdwg.mxu0
    %v634 = vmul.f32 %v631, 0.03125
    %v635 = vadd.f32 %v634, 1e-05
    %v636 = vrsqrt.pop %v635
    %v638 = vlaneseq
    %v639 = vshrl.u32 %v638, 7
    %v640 = vsub.s32 0, %v639
    %v641 = vrot.slane %v403, %v640
    %v643 = vmul.f32 %v636, %v641
    %v646 = vunpack.c.l.s4 1966171168
    %v647 = vunpack.c.0.s8 %v646
    %v648 = vlaneseq
    %v649 = vshrl.u32 %v648, 7
    %v650 = vsub.s32 %v647, %v649
    %v651 = vrot.slane %v643, %v650
    %v652 = vcombine.high %v651, %v651
    %v654 = vunpack.c.l.s4 1966171168
    %v655 = vunpack.c.0.s8 %v654
    %v656 = vlaneseq
    %v657 = vshrl.u32 %v656, 7
    %v658 = vsub.s32 %v655, %v657
    %v659 = vrot.slane %v651, %v658
    %v661 = vunpack.c.l.s4 1966171168
    %v662 = vunpack.c.0.s8 %v661
    %v663 = vlaneseq
    %v664 = vshrl.u32 %v663, 7
    %v665 = vsub.s32 %v662, %v664
    %v666 = vrot.slane %v652, %v665
    %v667 = vlaneseq
    %v668 = vshrl.u32 %v667, 7
    %v669 = vsub.s32 0, %v668
    %v670 = vrot.slane %v659, %v669
    %v671 = vlaneseq
    %v672 = vshrl.u32 %v671, 7
    %v673 = vsub.s32 0, %v672
    %v674 = vrot.slane %v666, %v673
    %v677 = vmul.f32 %v533, %v670
    %v678 = vmul.f32 %v534, %v670
    %v679 = vmul.f32 %v535, %v674
    %v680 = vmul.f32 %v536, %v674
    %v682 = vlaneseq
    %v683 = vshrl.u32 %v682, 7
    %v684 = vsub.s32 0, %v683
    %v685 = vrot.slane %v404, %v684
    %v687 = vadd.f32 %v677, %v685
    %v688 = vadd.f32 %v678, %v685
    %v689 = vadd.f32 %v679, %v685
    %v690 = vadd.f32 %v680, %v685
    %v691 = vmin.f32 %v687, 30.0
    %v692 = vmin.f32 %v688, 30.0
    %v693 = vmin.f32 %v689, 30.0
    %v694 = vmin.f32 %v690, 30.0
    %v695 = vmul.f32 %v691, 1.442695
    %v696 = vpow.pop %v695
    %v697 = vmul.f32 %v692, 1.442695
    %v698 = vpow.pop %v697
    %v699 = vmul.f32 %v693, 1.442695
    %v700 = vpow.pop %v699
    %v701 = vmul.f32 %v694, 1.442695
    %v702 = vpow.pop %v701
    %v703 = vadd.f32 %v696, 2.0
    %v704 = vadd.f32 %v698, 2.0
    %v705 = vadd.f32 %v700, 2.0
    %v706 = vadd.f32 %v702, 2.0
    %v707 = vmul.f32 %v696, %v703
    %v708 = vmul.f32 %v698, %v704
    %v709 = vmul.f32 %v700, %v705
    %v710 = vmul.f32 %v702, %v706
    %v711 = vmul.f32 %v687, %v707
    %v712 = vmul.f32 %v688, %v708
    %v713 = vmul.f32 %v689, %v709
    %v714 = vmul.f32 %v690, %v710
    %v715 = vadd.f32 %v707, 2.0
    %v716 = vadd.f32 %v708, 2.0
    %v717 = vadd.f32 %v709, 2.0
    %v718 = vadd.f32 %v710, 2.0
    %v719 = vrcp.pop %v715
    %v720 = vrcp.pop %v716
    %v721 = vrcp.pop %v717
    %v722 = vrcp.pop %v718
    %v723 = vmul.f32 %v711, %v719
    %v724 = vmul.f32 %v712, %v720
    %v725 = vmul.f32 %v713, %v721
    %v726 = vmul.f32 %v714, %v722
    %v727 = vld [vmem:[#allocation5] sm:$0x3]
    %v728 = vmin.f32 %v727, 30.0
    %v729 = vmul.f32 %v728, 1.442695
    %v730 = vpow.pop %v729
    %v731 = vadd.f32 %v730, 2.0
    %v732 = vmul.f32 %v730, %v731
    %v733 = vmul.f32 %v727, %v732
    %v734 = vadd.f32 %v732, 2.0
    %v735 = vrcp.pop %v734
    %v736 = vmul.f32 %v733, %v735
    %v737 = vpack.c.bf16 %v736, %v736
    %v738 = vld [vmem:[#allocation14] sm:$0xf]
    %v739 = vld [vmem:[#allocation14 + $0x4] sm:$0xf]
    %v740 = vld [vmem:[#allocation14 + $0x8] sm:$0xf]
    %v741 = vld [vmem:[#allocation14 + $0xc] sm:$0xf]
    %v742 = vld [vmem:[#allocation16] sm:$0x1]
    %v744 = vlaneseq
    %v745 = vshrl.u32 %v744, 7
    %v746 = vsub.s32 0, %v745
    %v747 = vrot.slane %v742, %v746
    %v753 = vunpack.c.l.b16 %v738
    %v754 = vunpack.c.l.b16 %v739
    %v755 = vunpack.c.l.b16 %v740
    %v756 = vunpack.c.l.b16 %v741
    %v757 = vpack.c.b16 %v754, %v753
    %v758 = vpack.c.b16 %v756, %v755
    %vm761 = vcmask 261120
    %v763 = vsel %vm761, %v737, 0
    %765 = vmatprep.subr.bf16.mxu0 0
    %766 = vmatpush1.bf16.msra.mxu0 %v757
    %767 = vmatprep.subr.bf16.mxu0 0
    %768 = vmatpush1.bf16.msra.mxu0 %v758
    %769 = vmatprep.subr.bf16.mxu0 0
    %770 = vmatpush1.bf16.msra.mxu0 0
    %771 = vmatprep.subr.bf16.mxu0 0
    %772 = vmatpush1.bf16.msra.mxu0 0
    %773 = vmatprep.subr.bf16.mxu0 0
    %774 = vmatpush1.bf16.msra.mxu0 0
    %775 = vmatprep.subr.bf16.mxu0 0
    %776 = vmatpush1.bf16.msra.mxu0 0
    %777 = vmatprep.subr.bf16.mxu0 0
    %778 = vmatpush1.bf16.msra.mxu0 0
    %779 = vmatprep.subr.bf16.mxu0 0
    %780 = vmatpush1.bf16.msra.mxu0 0
    %781 = vmatprep.subr.bf16.mxu0 0
    %782 = vmatpush1.bf16.msra.mxu0 0
    %783 = vmatprep.subr.bf16.mxu0 0
    %784 = vmatpush1.bf16.msra.mxu0 0
    %785 = vmatprep.subr.bf16.mxu0 0
    %786 = vmatpush1.bf16.msra.mxu0 0
    %787 = vmatprep.subr.bf16.mxu0 0
    %788 = vmatpush1.bf16.msra.mxu0 0
    %789 = vmatprep.subr.bf16.mxu0 0
    %790 = vmatpush1.bf16.msra.mxu0 0
    %791 = vmatprep.subr.bf16.mxu0 0
    %792 = vmatpush1.bf16.msra.mxu0 0
    %793 = vmatprep.subr.bf16.mxu0 0
    %794 = vmatpush1.bf16.msra.mxu0 0
    %795 = vmatprep.subr.bf16.mxu0 0
    %796 = vmatpush1.bf16.msra.mxu0 0
    %797 = vmatprep.mubr.bf16.mxu0 0
    %798 = vmatmul.mubr.bf16.gmra.mrb[0].mxu0 %v763
    %v799 = vpop.f32.mrb[0].mxu0
    %v800 = vadd.f32 %v747, %v799
    %v801 = vpop.f32.mrb[0].mxu0
    %v802 = vpop.f32.mrb[0].mxu0
    %v803 = vpop.f32.mrb[0].mxu0
    %804 = vdwg.mxu0
    %v807 = vunpack.c.l.s4 1966171168
    %v808 = vunpack.c.0.s8 %v807
    %v809 = vlaneseq
    %v810 = vshrl.u32 %v809, 7
    %v811 = vsub.s32 %v808, %v810
    %v812 = vrot.slane %v800, %v811
    %v813 = vcombine.high %v812, %v812
    %v815 = vunpack.c.l.s4 1966171168
    %v816 = vunpack.c.0.s8 %v815
    %v817 = vlaneseq
    %v818 = vshrl.u32 %v817, 7
    %v819 = vsub.s32 %v816, %v818
    %v820 = vrot.slane %v812, %v819
    %v822 = vunpack.c.l.s4 1966171168
    %v823 = vunpack.c.0.s8 %v822
    %v824 = vlaneseq
    %v825 = vshrl.u32 %v824, 7
    %v826 = vsub.s32 %v823, %v825
    %v827 = vrot.slane %v813, %v826
    %v828 = vlaneseq
    %v829 = vshrl.u32 %v828, 7
    %v830 = vsub.s32 0, %v829
    %v831 = vrot.slane %v820, %v830
    %v832 = vlaneseq
    %v833 = vshrl.u32 %v832, 7
    %v834 = vsub.s32 0, %v833
    %v835 = vrot.slane %v827, %v834
    %v838 = vadd.f32 %v723, %v831
    %v839 = vadd.f32 %v724, %v831
    %v840 = vadd.f32 %v725, %v835
    %v841 = vadd.f32 %v726, %v835
    %v846 = vrot.slane %v838, 7
    %v847 = vrot.slane %v839, 7
    %v848 = vsel %vm245, %v846, %v847
    %v849 = vrot.slane %v840, 7
    %v850 = vrot.slane %v841, 7
    %v851 = vsel %vm245, %v849, %v850
    %v858 = vsel %vm245, 0.0, %v846
    %v859 = vsel %vm245, 0.0, %v849
    %v860 = vsel %vm245, %v847, 0.0
    %v861 = vsel %vm245, %v850, 0.0
    %v866 = vrot.slane %v858, 1
    %v867 = vrot.slane %v848, 1
    %v868 = vsel %vm266, %v866, %v867
    %v869 = vrot.slane %v860, 1
    %v870 = vsel %vm266, %v867, %v869
    %v871 = vrot.slane %v859, 1
    %v872 = vrot.slane %v851, 1
    %v873 = vsel %vm266, %v871, %v872
    %v874 = vrot.slane %v861, 1
    %v875 = vsel %vm266, %v872, %v874
    %876 = vrot.lane.b32.xlu0 %v868, 16
    %v877 = vpop.permute.xlu0 %876
    %878 = vrot.lane.b32.xlu0 %v870, 16
    %v879 = vpop.permute.xlu0 %878
    %880 = vrot.lane.b32.xlu0 %v873, 16
    %v881 = vpop.permute.xlu0 %880
    %882 = vrot.lane.b32.xlu0 %v875, 16
    %v883 = vpop.permute.xlu0 %882
    %v888 = vrot.slane %v858, 2
    %v889 = vrot.slane %v848, 2
    %v890 = vsel %vm289, %v888, %v889
    %v891 = vrot.slane %v860, 2
    %v892 = vsel %vm289, %v889, %v891
    %v893 = vrot.slane %v859, 2
    %v894 = vrot.slane %v851, 2
    %v895 = vsel %vm289, %v893, %v894
    %v896 = vrot.slane %v861, 2
    %v897 = vsel %vm289, %v894, %v896
    %898 = vrot.lane.b32.xlu0 %v890, 32
    %v899 = vpop.permute.xlu0 %898
    %900 = vrot.lane.b32.xlu0 %v892, 32
    %v901 = vpop.permute.xlu0 %900
    %902 = vrot.lane.b32.xlu0 %v895, 32
    %v903 = vpop.permute.xlu0 %902
    %904 = vrot.lane.b32.xlu0 %v897, 32
    %v905 = vpop.permute.xlu0 %904
    %v910 = vsel %vm317, %v858, %v877
    %v911 = vsel %vm317, %v848, %v879
    %v912 = vsel %vm317, %v859, %v881
    %v913 = vsel %vm317, %v851, %v883
    %v914 = vsel %vm761, %v910, %v899
    %v915 = vsel %vm761, %v911, %v901
    %v916 = vsel %vm761, %v912, %v903
    %v917 = vsel %vm761, %v913, %v905
    %v918 = vpack.c.bf16 %v915, %v914
    %v919 = vpack.c.bf16 %v917, %v916
    %v920 = vld [vmem:[#allocation17] sm:$0xf]
    %v921 = vld [vmem:[#allocation17 + $0x4] sm:$0xf]
    %v922 = vld [vmem:[#allocation17 + $0x8] sm:$0xf]
    %v923 = vld [vmem:[#allocation17 + $0xc] sm:$0xf]
    %v924 = vld [vmem:[#allocation17 + $0x10] sm:$0xf]
    %v925 = vld [vmem:[#allocation17 + $0x14] sm:$0xf]
    %v926 = vld [vmem:[#allocation19] sm:$0x1]
    %v928 = vlaneseq
    %v929 = vshrl.u32 %v928, 7
    %v930 = vsub.s32 0, %v929
    %v931 = vrot.slane %v926, %v930
    %v939 = vunpack.c.l.b16 %v920
    %v940 = vunpack.c.l.b16 %v921
    %v941 = vunpack.c.l.b16 %v922
    %v942 = vunpack.c.l.b16 %v923
    %v943 = vunpack.c.l.b16 %v924
    %v944 = vunpack.c.l.b16 %v925
    %v945 = vpack.c.b16 %v940, %v939
    %v946 = vpack.c.b16 %v942, %v941
    %v947 = vpack.c.b16 %v944, %v943
    %vm951 = vcmask 392192
    %v953 = vsel %vm951, %v918, 0
    %v956 = vsel %vm951, %v919, 0
    %958 = vmatprep.subr.bf16.mxu0 0
    %959 = vmatpush1.bf16.msra.mxu0 %v945
    %960 = vmatprep.subr.bf16.mxu0 0
    %961 = vmatpush1.bf16.msra.mxu0 %v946
    %962 = vmatprep.subr.bf16.mxu0 0
    %963 = vmatpush1.bf16.msra.mxu0 %v947
    %964 = vmatprep.subr.bf16.mxu0 0
    %965 = vmatpush1.bf16.msra.mxu0 0
    %966 = vmatprep.subr.bf16.mxu0 0
    %967 = vmatpush1.bf16.msra.mxu0 0
    %968 = vmatprep.subr.bf16.mxu0 0
    %969 = vmatpush1.bf16.msra.mxu0 0
    %970 = vmatprep.subr.bf16.mxu0 0
    %971 = vmatpush1.bf16.msra.mxu0 0
    %972 = vmatprep.subr.bf16.mxu0 0
    %973 = vmatpush1.bf16.msra.mxu0 0
    %974 = vmatprep.subr.bf16.mxu0 0
    %975 = vmatpush1.bf16.msra.mxu0 0
    %976 = vmatprep.subr.bf16.mxu0 0
    %977 = vmatpush1.bf16.msra.mxu0 0
    %978 = vmatprep.subr.bf16.mxu0 0
    %979 = vmatpush1.bf16.msra.mxu0 0
    %980 = vmatprep.subr.bf16.mxu0 0
    %981 = vmatpush1.bf16.msra.mxu0 0
    %982 = vmatprep.subr.bf16.mxu0 0
    %983 = vmatpush1.bf16.msra.mxu0 0
    %984 = vmatprep.subr.bf16.mxu0 0
    %985 = vmatpush1.bf16.msra.mxu0 0
    %986 = vmatprep.subr.bf16.mxu0 0
    %987 = vmatpush1.bf16.msra.mxu0 0
    %988 = vmatprep.subr.bf16.mxu0 0
    %989 = vmatpush1.bf16.msra.mxu0 0
    %990 = vmatprep.mubr.bf16.mxu0 0
    %991 = vmatmul.mubr.bf16.gmra.mrb[0].mxu0 %v953
    %v992 = vpop.f32.mrb[0].mxu0
    %v993 = vadd.f32 %v931, %v992
    %v994 = vpop.f32.mrb[0].mxu0
    %v995 = vpop.f32.mrb[0].mxu0
    %v996 = vadd.f32 %v931, %v995
    %v997 = vpop.f32.mrb[0].mxu0
    %998 = vmatprep.mubr.bf16.mxu0 0
    %999 = vmatmul.mubr.bf16.gmra.mrb[0].mxu0 %v956
    %v1000 = vpop.f32.mrb[0].mxu0
    %v1001 = vadd.f32 %v931, %v1000
    %v1002 = vpop.f32.mrb[0].mxu0
    %v1003 = vpop.f32.mrb[0].mxu0
    %v1004 = vadd.f32 %v931, %v1003
    %v1005 = vpop.f32.mrb[0].mxu0
    %1006 = vdwg.mxu0
    %v1007 = vld [vmem:[#allocation20] sm:$0x1]
    %v1008 = vld [vmem:[#allocation22] sm:$0x1]
    %v1009 = vsel %vm317, %v993, 0.0
    %v1010 = vsel %vm317, %v996, 0.0
    %v1011 = vadd.f32 %v1009, %v1010
    %v1012 = vrot.slane %v1011, 4
    %v1013 = vadd.f32 %v1011, %v1012
    %v1014 = vrot.slane %v1013, 2
    %v1015 = vadd.f32 %v1013, %v1014
    %v1016 = vrot.slane %v1015, 1
    %v1017 = vadd.f32 %v1015, %v1016
    %v1018 = vsel %vm317, %v1001, 0.0
    %v1019 = vsel %vm317, %v1004, 0.0
    %v1020 = vadd.f32 %v1018, %v1019
    %v1021 = vrot.slane %v1020, 4
    %v1022 = vadd.f32 %v1020, %v1021
    %v1023 = vrot.slane %v1022, 2
    %v1024 = vadd.f32 %v1022, %v1023
    %v1025 = vrot.slane %v1024, 1
    %v1026 = vadd.f32 %v1024, %v1025
    %v1029 = vsel %vm425, %v1026, %v1017
    %v1030 = vsel %vm317, %v1029, 0
    %1032 = vmatprep.subr.mxu0 0.0
    %1033 = vmatpush1.msra.mxu0 %v235
    %1034 = vmatprep.subr.mxu0 0.0
    %1035 = vmatpush1.msra.mxu0 %v236
    %1036 = vmatprep.subr.mxu0 0.0
    %1037 = vmatpush1.msra.mxu0 0.0
    %1038 = vmatprep.subr.mxu0 0.0
    %1039 = vmatpush1.msra.mxu0 0.0
    %1040 = vmatprep.subr.mxu0 0.0
    %1041 = vmatpush1.msra.mxu0 0.0
    %1042 = vmatprep.subr.mxu0 0.0
    %1043 = vmatpush1.msra.mxu0 0.0
    %1044 = vmatprep.subr.mxu0 0.0
    %1045 = vmatpush1.msra.mxu0 0.0
    %1046 = vmatprep.subr.mxu0 0.0
    %1047 = vmatpush1.msra.mxu0 0.0
    %1048 = vmatprep.subr.mxu0 0.0
    %1049 = vmatpush1.msra.mxu0 0.0
    %1050 = vmatprep.subr.mxu0 0.0
    %1051 = vmatpush1.msra.mxu0 0.0
    %1052 = vmatprep.subr.mxu0 0.0
    %1053 = vmatpush1.msra.mxu0 0.0
    %1054 = vmatprep.subr.mxu0 0.0
    %1055 = vmatpush1.msra.mxu0 0.0
    %1056 = vmatprep.subr.mxu0 0.0
    %1057 = vmatpush1.msra.mxu0 0.0
    %1058 = vmatprep.subr.mxu0 0.0
    %1059 = vmatpush1.msra.mxu0 0.0
    %1060 = vmatprep.subr.mxu0 0.0
    %1061 = vmatpush1.msra.mxu0 0.0
    %1062 = vmatprep.subr.mxu0 0.0
    %1063 = vmatpush1.msra.mxu0 0.0
    %1064 = vmatprep.subr.mxu0 0.0
    %1065 = vmatpush1.msra.mxu0 0.0
    %1066 = vmatprep.subr.mxu0 0.0
    %1067 = vmatpush1.msra.mxu0 0.0
    %1068 = vmatprep.subr.mxu0 0.0
    %1069 = vmatpush1.msra.mxu0 0.0
    %1070 = vmatprep.subr.mxu0 0.0
    %1071 = vmatpush1.msra.mxu0 0.0
    %1072 = vmatprep.subr.mxu0 0.0
    %1073 = vmatpush1.msra.mxu0 0.0
    %1074 = vmatprep.subr.mxu0 0.0
    %1075 = vmatpush1.msra.mxu0 0.0
    %1076 = vmatprep.subr.mxu0 0.0
    %1077 = vmatpush1.msra.mxu0 0.0
    %1078 = vmatprep.subr.mxu0 0.0
    %1079 = vmatpush1.msra.mxu0 0.0
    %1080 = vmatprep.subr.mxu0 0.0
    %1081 = vmatpush1.msra.mxu0 0.0
    %1082 = vmatprep.subr.mxu0 0.0
    %1083 = vmatpush1.msra.mxu0 0.0
    %1084 = vmatprep.subr.mxu0 0.0
    %1085 = vmatpush1.msra.mxu0 0.0
    %1086 = vmatprep.subr.mxu0 0.0
    %1087 = vmatpush1.msra.mxu0 0.0
    %1088 = vmatprep.subr.mxu0 0.0
    %1089 = vmatpush1.msra.mxu0 0.0
    %1090 = vmatprep.subr.mxu0 0.0
    %1091 = vmatpush1.msra.mxu0 0.0
    %1092 = vmatprep.subr.mxu0 0.0
    %1093 = vmatpush1.msra.mxu0 0.0
    %1094 = vmatprep.subr.mxu0 0.0
    %1095 = vmatpush1.msra.mxu0 0.0
    %1096 = vmatprep.mubr.f32.mxu0 0.0
    %1097 = vmatmul.mubr.f32.gmra.mrb[0].mxu0 %v1030
    %v1098 = vpop.f32.mrb[0].mxu0
    %v1099 = vadd.f32 0.0, %v1098
    %v1100 = vpop.f32.mrb[0].mxu0
    %1101 = vdwg.mxu0
    %v1102 = vmul.f32 %v1099, 0.03125
    %v1105 = vunpack.c.l.s4 1966171168
    %v1106 = vunpack.c.0.s8 %v1105
    %v1107 = vlaneseq
    %v1108 = vshrl.u32 %v1107, 7
    %v1109 = vsub.s32 %v1106, %v1108
    %v1110 = vrot.slane %v1102, %v1109
    %v1111 = vcombine.high %v1110, %v1110
    %v1113 = vunpack.c.l.s4 1966171168
    %v1114 = vunpack.c.0.s8 %v1113
    %v1115 = vlaneseq
    %v1116 = vshrl.u32 %v1115, 7
    %v1117 = vsub.s32 %v1114, %v1116
    %v1118 = vrot.slane %v1110, %v1117
    %v1120 = vunpack.c.l.s4 1966171168
    %v1121 = vunpack.c.0.s8 %v1120
    %v1122 = vlaneseq
    %v1123 = vshrl.u32 %v1122, 7
    %v1124 = vsub.s32 %v1121, %v1123
    %v1125 = vrot.slane %v1111, %v1124
    %v1126 = vlaneseq
    %v1127 = vshrl.u32 %v1126, 7
    %v1128 = vsub.s32 0, %v1127
    %v1129 = vrot.slane %v1118, %v1128
    %v1130 = vlaneseq
    %v1131 = vshrl.u32 %v1130, 7
    %v1132 = vsub.s32 0, %v1131
    %v1133 = vrot.slane %v1125, %v1132
    %v1136 = vsub.f32 %v993, %v1129
    %v1137 = vsub.f32 %v996, %v1129
    %v1138 = vsub.f32 %v1001, %v1133
    %v1139 = vsub.f32 %v1004, %v1133
    %v1140 = vmul.f32 %v1136, %v1136
    %v1141 = vmul.f32 %v1137, %v1137
    %v1142 = vmul.f32 %v1138, %v1138
    %v1143 = vmul.f32 %v1139, %v1139
    %v1144 = vsel %vm317, %v1140, 0.0
    %v1145 = vsel %vm317, %v1141, 0.0
    %v1146 = vadd.f32 %v1144, %v1145
    %v1147 = vrot.slane %v1146, 4
    %v1148 = vadd.f32 %v1146, %v1147
    %v1149 = vrot.slane %v1148, 2
    %v1150 = vadd.f32 %v1148, %v1149
    %v1151 = vrot.slane %v1150, 1
    %v1152 = vadd.f32 %v1150, %v1151
    %v1153 = vsel %vm317, %v1142, 0.0
    %v1154 = vsel %vm317, %v1143, 0.0
    %v1155 = vadd.f32 %v1153, %v1154
    %v1156 = vrot.slane %v1155, 4
    %v1157 = vadd.f32 %v1155, %v1156
    %v1158 = vrot.slane %v1157, 2
    %v1159 = vadd.f32 %v1157, %v1158
    %v1160 = vrot.slane %v1159, 1
    %v1161 = vadd.f32 %v1159, %v1160
    %v1164 = vsel %vm425, %v1161, %v1152
    %v1165 = vsel %vm317, %v1164, 0
    %1167 = vmatprep.subr.mxu0 0.0
    %1168 = vmatpush1.msra.mxu0 %v235
    %1169 = vmatprep.subr.mxu0 0.0
    %1170 = vmatpush1.msra.mxu0 %v236
    %1171 = vmatprep.subr.mxu0 0.0
    %1172 = vmatpush1.msra.mxu0 0.0
    %1173 = vmatprep.subr.mxu0 0.0
    %1174 = vmatpush1.msra.mxu0 0.0
    %1175 = vmatprep.subr.mxu0 0.0
    %1176 = vmatpush1.msra.mxu0 0.0
    %1177 = vmatprep.subr.mxu0 0.0
    %1178 = vmatpush1.msra.mxu0 0.0
    %1179 = vmatprep.subr.mxu0 0.0
    %1180 = vmatpush1.msra.mxu0 0.0
    %1181 = vmatprep.subr.mxu0 0.0
    %1182 = vmatpush1.msra.mxu0 0.0
    %1183 = vmatprep.subr.mxu0 0.0
    %1184 = vmatpush1.msra.mxu0 0.0
    %1185 = vmatprep.subr.mxu0 0.0
    %1186 = vmatpush1.msra.mxu0 0.0
    %1187 = vmatprep.subr.mxu0 0.0
    %1188 = vmatpush1.msra.mxu0 0.0
    %1189 = vmatprep.subr.mxu0 0.0
    %1190 = vmatpush1.msra.mxu0 0.0
    %1191 = vmatprep.subr.mxu0 0.0
    %1192 = vmatpush1.msra.mxu0 0.0
    %1193 = vmatprep.subr.mxu0 0.0
    %1194 = vmatpush1.msra.mxu0 0.0
    %1195 = vmatprep.subr.mxu0 0.0
    %1196 = vmatpush1.msra.mxu0 0.0
    %1197 = vmatprep.subr.mxu0 0.0
    %1198 = vmatpush1.msra.mxu0 0.0
    %1199 = vmatprep.subr.mxu0 0.0
    %1200 = vmatpush1.msra.mxu0 0.0
    %1201 = vmatprep.subr.mxu0 0.0
    %1202 = vmatpush1.msra.mxu0 0.0
    %1203 = vmatprep.subr.mxu0 0.0
    %1204 = vmatpush1.msra.mxu0 0.0
    %1205 = vmatprep.subr.mxu0 0.0
    %1206 = vmatpush1.msra.mxu0 0.0
    %1207 = vmatprep.subr.mxu0 0.0
    %1208 = vmatpush1.msra.mxu0 0.0
    %1209 = vmatprep.subr.mxu0 0.0
    %1210 = vmatpush1.msra.mxu0 0.0
    %1211 = vmatprep.subr.mxu0 0.0
    %1212 = vmatpush1.msra.mxu0 0.0
    %1213 = vmatprep.subr.mxu0 0.0
    %1214 = vmatpush1.msra.mxu0 0.0
    %1215 = vmatprep.subr.mxu0 0.0
    %1216 = vmatpush1.msra.mxu0 0.0
    %1217 = vmatprep.subr.mxu0 0.0
    %1218 = vmatpush1.msra.mxu0 0.0
    %1219 = vmatprep.subr.mxu0 0.0
    %1220 = vmatpush1.msra.mxu0 0.0
    %1221 = vmatprep.subr.mxu0 0.0
    %1222 = vmatpush1.msra.mxu0 0.0
    %1223 = vmatprep.subr.mxu0 0.0
    %1224 = vmatpush1.msra.mxu0 0.0
    %1225 = vmatprep.subr.mxu0 0.0
    %1226 = vmatpush1.msra.mxu0 0.0
    %1227 = vmatprep.subr.mxu0 0.0
    %1228 = vmatpush1.msra.mxu0 0.0
    %1229 = vmatprep.subr.mxu0 0.0
    %1230 = vmatpush1.msra.mxu0 0.0
    %1231 = vmatprep.mubr.f32.mxu0 0.0
    %1232 = vmatmul.mubr.f32.gmra.mrb[0].mxu0 %v1165
    %v1233 = vpop.f32.mrb[0].mxu0
    %v1234 = vadd.f32 0.0, %v1233
    %v1235 = vpop.f32.mrb[0].mxu0
    %1236 = vdwg.mxu0
    %v1237 = vmul.f32 %v1234, 0.03125
    %v1238 = vadd.f32 %v1237, 1e-05
    %v1239 = vrsqrt.pop %v1238
    %v1241 = vlaneseq
    %v1242 = vshrl.u32 %v1241, 7
    %v1243 = vsub.s32 0, %v1242
    %v1244 = vrot.slane %v1007, %v1243
    %v1246 = vmul.f32 %v1239, %v1244
    %v1249 = vunpack.c.l.s4 1966171168
    %v1250 = vunpack.c.0.s8 %v1249
    %v1251 = vlaneseq
    %v1252 = vshrl.u32 %v1251, 7
    %v1253 = vsub.s32 %v1250, %v1252
    %v1254 = vrot.slane %v1246, %v1253
    %v1255 = vcombine.high %v1254, %v1254
    %v1257 = vunpack.c.l.s4 1966171168
    %v1258 = vunpack.c.0.s8 %v1257
    %v1259 = vlaneseq
    %v1260 = vshrl.u32 %v1259, 7
    %v1261 = vsub.s32 %v1258, %v1260
    %v1262 = vrot.slane %v1254, %v1261
    %v1264 = vunpack.c.l.s4 1966171168
    %v1265 = vunpack.c.0.s8 %v1264
    %v1266 = vlaneseq
    %v1267 = vshrl.u32 %v1266, 7
    %v1268 = vsub.s32 %v1265, %v1267
    %v1269 = vrot.slane %v1255, %v1268
    %v1270 = vlaneseq
    %v1271 = vshrl.u32 %v1270, 7
    %v1272 = vsub.s32 0, %v1271
    %v1273 = vrot.slane %v1262, %v1272
    %v1274 = vlaneseq
    %v1275 = vshrl.u32 %v1274, 7
    %v1276 = vsub.s32 0, %v1275
    %v1277 = vrot.slane %v1269, %v1276
    %v1280 = vmul.f32 %v1136, %v1273
    %v1281 = vmul.f32 %v1137, %v1273
    %v1282 = vmul.f32 %v1138, %v1277
    %v1283 = vmul.f32 %v1139, %v1277
    %v1285 = vlaneseq
    %v1286 = vshrl.u32 %v1285, 7
    %v1287 = vsub.s32 0, %v1286
    %v1288 = vrot.slane %v1008, %v1287
    %v1290 = vadd.f32 %v1280, %v1288
    %v1291 = vadd.f32 %v1281, %v1288
    %v1292 = vadd.f32 %v1282, %v1288
    %v1293 = vadd.f32 %v1283, %v1288
    %v1294 = vmin.f32 %v1290, 30.0
    %v1295 = vmin.f32 %v1291, 30.0
    %v1296 = vmin.f32 %v1292, 30.0
    %v1297 = vmin.f32 %v1293, 30.0
    %v1298 = vmul.f32 %v1294, 1.442695
    %v1299 = vpow.pop %v1298
    %v1300 = vmul.f32 %v1295, 1.442695
    %v1301 = vpow.pop %v1300
    %v1302 = vmul.f32 %v1296, 1.442695
    %v1303 = vpow.pop %v1302
    %v1304 = vmul.f32 %v1297, 1.442695
    %v1305 = vpow.pop %v1304
    %v1306 = vadd.f32 %v1299, 2.0
    %v1307 = vadd.f32 %v1301, 2.0
    %v1308 = vadd.f32 %v1303, 2.0
    %v1309 = vadd.f32 %v1305, 2.0
    %v1310 = vmul.f32 %v1299, %v1306
    %v1311 = vmul.f32 %v1301, %v1307
    %v1312 = vmul.f32 %v1303, %v1308
    %v1313 = vmul.f32 %v1305, %v1309
    %v1314 = vmul.f32 %v1290, %v1310
    %v1315 = vmul.f32 %v1291, %v1311
    %v1316 = vmul.f32 %v1292, %v1312
    %v1317 = vmul.f32 %v1293, %v1313
    %v1318 = vadd.f32 %v1310, 2.0
    %v1319 = vadd.f32 %v1311, 2.0
    %v1320 = vadd.f32 %v1312, 2.0
    %v1321 = vadd.f32 %v1313, 2.0
    %v1322 = vrcp.pop %v1318
    %v1323 = vrcp.pop %v1319
    %v1324 = vrcp.pop %v1320
    %v1325 = vrcp.pop %v1321
    %v1326 = vmul.f32 %v1314, %v1322
    %v1327 = vmul.f32 %v1315, %v1323
    %v1328 = vmul.f32 %v1316, %v1324
    %v1329 = vmul.f32 %v1317, %v1325
    %v1330 = vpack.c.bf16 %v238, %v237
    %v1331 = vpack.c.bf16 %v240, %v239
    %v1332 = vld [vmem:[#allocation23] sm:$0xf]
    %v1333 = vld [vmem:[#allocation25] sm:$0x1]
    %v1335 = vlaneseq
    %v1336 = vshrl.u32 %v1335, 7
    %v1337 = vsub.s32 0, %v1336
    %v1338 = vrot.slane %v1333, %v1337
    %v1341 = vsel %vm312, %v1330, 0
    %v1344 = vsel %vm312, %v1331, 0
    %v1347 = vsel %vm350, %v1332, 0
    %1349 = vmatprep.subr.bf16.mxu0 0
    %1350 = vmatpush1.bf16.msra.mxu0 %v1347
    %1351 = vmatprep.subr.bf16.mxu0 0
    %1352 = vmatpush1.bf16.msra.mxu0 0
    %1353 = vmatprep.subr.bf16.mxu0 0
    %1354 = vmatpush1.bf16.msra.mxu0 0
    %1355 = vmatprep.subr.bf16.mxu0 0
    %1356 = vmatpush1.bf16.msra.mxu0 0
    %1357 = vmatprep.subr.bf16.mxu0 0
    %1358 = vmatpush1.bf16.msra.mxu0 0
    %1359 = vmatprep.subr.bf16.mxu0 0
    %1360 = vmatpush1.bf16.msra.mxu0 0
    %1361 = vmatprep.subr.bf16.mxu0 0
    %1362 = vmatpush1.bf16.msra.mxu0 0
    %1363 = vmatprep.subr.bf16.mxu0 0
    %1364 = vmatpush1.bf16.msra.mxu0 0
    %1365 = vmatprep.subr.bf16.mxu0 0
    %1366 = vmatpush1.bf16.msra.mxu0 0
    %1367 = vmatprep.subr.bf16.mxu0 0
    %1368 = vmatpush1.bf16.msra.mxu0 0
    %1369 = vmatprep.subr.bf16.mxu0 0
    %1370 = vmatpush1.bf16.msra.mxu0 0
    %1371 = vmatprep.subr.bf16.mxu0 0
    %1372 = vmatpush1.bf16.msra.mxu0 0
    %1373 = vmatprep.subr.bf16.mxu0 0
    %1374 = vmatpush1.bf16.msra.mxu0 0
    %1375 = vmatprep.subr.bf16.mxu0 0
    %1376 = vmatpush1.bf16.msra.mxu0 0
    %1377 = vmatprep.subr.bf16.mxu0 0
    %1378 = vmatpush1.bf16.msra.mxu0 0
    %1379 = vmatprep.subr.bf16.mxu0 0
    %1380 = vmatpush1.bf16.msra.mxu0 0
    %1381 = vmatprep.mubr.bf16.mxu0 0
    %1382 = vmatmul.mubr.bf16.gmra.mrb[0].mxu0 %v1341
    %v1383 = vpop.f32.mrb[0].mxu0
    %v1384 = vadd.f32 %v1338, %v1383
    %v1385 = vpop.f32.mrb[0].mxu0
    %v1386 = vpop.f32.mrb[0].mxu0
    %v1387 = vadd.f32 %v1338, %v1386
    %v1388 = vpop.f32.mrb[0].mxu0
    %1389 = vmatprep.mubr.bf16.mxu0 0
    %1390 = vmatmul.mubr.bf16.gmra.mrb[0].mxu0 %v1344
    %v1391 = vpop.f32.mrb[0].mxu0
    %v1392 = vadd.f32 %v1338, %v1391
    %v1393 = vpop.f32.mrb[0].mxu0
    %v1394 = vpop.f32.mrb[0].mxu0
    %v1395 = vadd.f32 %v1338, %v1394
    %v1396 = vpop.f32.mrb[0].mxu0
    %1397 = vdwg.mxu0
    %v1398 = vadd.f32 %v1326, %v1384
    %v1399 = vadd.f32 %v1327, %v1387
    %v1400 = vadd.f32 %v1328, %v1392
    %v1401 = vadd.f32 %v1329, %v1395
    %1402 = vst.msk [vmem:[#allocation26] sm:$0xff] %vm317, %v1398
    %1403 = vst.msk [vmem:[#allocation26 + $0x8] sm:$0xff] %vm317, %v1399
    %1404 = vst.msk [vmem:[#allocation26 + $0x10] sm:$0xff] %vm317, %v1400
    %1405 = vst.msk [vmem:[#allocation26 + $0x18] sm:$0xff] %vm317, %v1401
    // Predicated region
    $region122: #{tpu_custom_call.1} parent=1 // pred_check
      _
    $region123: #{tpu_custom_call.1} parent=1 // pred_check_branch
      %1407 = sbr.rel (0) target = $region125
    $region124: #{tpu_custom_call.1} parent=1 // pred_region
      %s1409 = ssub.s32 512, 512
      %1410 = vsyncadd [#allocation4], %s1409
      %s1411 = sshll.u32 [#allocation26], 4
      %s1412 = int_to_ptr.vmem [resolvable:$true] %s1411
      %1417 = dma.vmem_to_hbm [thread:$0]  %s1412, 512, %s15, [#allocation4], 128, 128, 8
    $region125: #{tpu_custom_call.1} parent=1 // pred_fallthru
      _
    // Predicated region
    $region126: #{tpu_custom_call.1} parent=1 // pred_check
      _
    $region127: #{tpu_custom_call.1} parent=1 // pred_check_branch
      %1419 = sbr.rel (0) target = $region129
    $region128: #{tpu_custom_call.1} parent=1 // pred_region
      %1420 = dma.done [#allocation4], 512
    $region129: #{tpu_custom_call.1} parent=1 // pred_fallthru
      _
    %1421 = vsyncpa [#allocation3], 1
    %1422 = vsyncpa [#allocation6], 1
    %1423 = vsyncpa [#allocation9], 1
    %1424 = vsyncpa [#allocation12], 1
    %1425 = vsyncpa [#allocation15], 1
    %1426 = vsyncpa [#allocation18], 1
    %1427 = vsyncpa [#allocation21], 1
    %1428 = vsyncpa [#allocation24], 1
    %1429 = vsyncpa [#allocation4], 1

</llo_original>
